<compile_context>
chip_gen: v7x
topology: tpu7x:2x2x1
jax: 0.10.0
libtpu: 0.0.40
codegen_flags: <defaults>
</compile_context>

<pallas_src>
import jax
import jax.numpy as jnp
from jax.experimental import pallas as pl
from jax.experimental.pallas import tpu as pltpu

_LANE = 128


def _pooling_kernel(x_ref, inv_ref, o_ref):
    tb, h, w, tc = x_ref.shape
    xf = x_ref[...].astype(jnp.float32)          # (TB, H, W, TC): C on lanes, W on sublanes
    inv = inv_ref[...]                           # (1, H, W, 1) float32, loop-invariant

    # ---- W-axis zero-padded neighbor sum (sublane axis), via XLU rotates ------------------
    # sw[w] = x[w] + x[w-1]|0 + x[w+1]|0.  Rotate a copy whose edge columns are zeroed so the
    # wrapped element is always zero (direction-agnostic), then add the two edge-neighbor
    # contributions (x[0] -> w==1, x[W-1] -> w==W-2) back with tiny broadcast selects.
    x3 = xf.reshape(tb * h, w, tc)               # merge leading major dims (layout no-op)
    w_idx = jax.lax.broadcasted_iota(jnp.int32, (1, w, tc), 1)
    interior = jnp.logical_and(w_idx > 0, w_idx < w - 1)
    xz = jnp.where(interior, x3, 0.0)
    nb = pltpu.roll(xz, 1, axis=1) + pltpu.roll(xz, w - 1, axis=1)
    nb = nb + jnp.where(w_idx == 1, x3[:, 0:1, :], 0.0)
    nb = nb + jnp.where(w_idx == w - 2, x3[:, w - 1:w, :], 0.0)
    sw = (x3 + nb).reshape(tb, h, w, tc)

    # ---- H-axis zero-padded neighbor sum + finalize, written as row slices ----------------
    if h >= 3:
        mid = (sw[:, :-2] + sw[:, 1:-1] + sw[:, 2:]) * inv[:, 1:h - 1] - xf[:, 1:h - 1]
        top = (sw[:, 0:1] + sw[:, 1:2]) * inv[:, 0:1] - xf[:, 0:1]
        bot = (sw[:, h - 2:h - 1] + sw[:, h - 1:h]) * inv[:, h - 1:h] - xf[:, h - 1:h]
        o_ref[:, 1:h - 1] = mid.astype(o_ref.dtype)
        o_ref[:, 0:1] = top.astype(o_ref.dtype)
        o_ref[:, h - 1:h] = bot.astype(o_ref.dtype)
    else:
        # Tiny-H fallback (H in {1, 2}); negligible cost, never hit for real PoolFormer shapes.
        rows = [sw[:, max(0, i - 1):min(h, i + 2)].sum(axis=1, keepdims=True) for i in range(h)]
        s = rows[0] if h == 1 else jnp.concatenate(rows, axis=1)
        o_ref[...] = (s * inv - xf).astype(o_ref.dtype)


def _pick_tiles(b, h, w, c_pad, elt_bytes):
    """Choose (batch_tile, channel_tile, estimated per-block VMEM footprint)."""
    cap = 32 * 1024 * 1024           # per-block footprint cap; safe on v7x (64 MiB VMEM / TC)
    target_block = 2 * 1024 * 1024   # amortize the ~0.35 us per-grid-step overhead

    def footprint(tb, tc):
        blk = tb * h * w * tc
        io = 2 * 2 * blk * elt_bytes          # double-buffered input + output blocks
        work = 6 * blk * 4                    # f32 temporaries inside the body
        inv = h * w * 4 * _LANE               # (1,H,W,1) inv_count block, lane-padded
        return io + work + inv

    # Largest channel tile (multiple of 128, dividing c_pad, <= 512) that fits the cap.
    tc = _LANE
    t = _LANE
    while t <= min(c_pad, 512):
        if c_pad % t == 0 and footprint(1, t) <= cap:
            tc = t
        t += _LANE
    # TODO(synk): if footprint(1, 128) > cap (very large H*W), also tile H with a 1-row halo.

    # Pack batch images per block until it is a few MiB (small-image regime).
    tb = 1
    for cand in range(1, b + 1):
        if b % cand:
            continue
        if footprint(cand, tc) <= cap:
            tb = cand
            if cand * h * w * tc * elt_bytes >= target_block:
                break
        else:
            break
    return tb, tc, footprint(tb, tc)


def pooling(x):
    """x: (B, H, W, C) NHWC -> AvgPool2d(3, 1, 1, count_include_pad=False)(x) - x."""
    b, h, w, c = x.shape
    orig_c = c
    elt = jnp.dtype(x.dtype).itemsize

    # Lane-dense channels: pad C up to a multiple of 128 (channels are independent under a
    # spatial pool, so padding is exact; padded lanes are cropped after the call).
    c_pad = -(-c // _LANE) * _LANE
    if c_pad != c:
        x = jnp.pad(x, ((0, 0), (0, 0), (0, 0), (0, c_pad - c)))

    tb, tc, fp = _pick_tiles(b, h, w, c_pad, elt)
    grid = (b // tb, c_pad // tc)

    # count_include_pad=False denominator, hoisted out of the kernel (loop-invariant).
    hh = jnp.arange(h)
    ww = jnp.arange(w)
    cnt_h = jnp.minimum(hh + 1, h - 1) - jnp.maximum(hh - 1, 0) + 1
    cnt_w = jnp.minimum(ww + 1, w - 1) - jnp.maximum(ww - 1, 0) + 1
    inv_cnt = (1.0 / (cnt_h[:, None] * cnt_w[None, :]).astype(jnp.float32)).reshape(1, h, w, 1)

    vmem_limit = int(min(48 * 1024 * 1024, max(16 * 1024 * 1024, 2 * fp)))

    out = pl.pallas_call(
        _pooling_kernel,
        out_shape=jax.ShapeDtypeStruct((b, h, w, c_pad), x.dtype),
        grid_spec=pltpu.PrefetchScalarGridSpec(
            num_scalar_prefetch=0,
            grid=grid,
            in_specs=[
                pl.BlockSpec((tb, h, w, tc), lambda i, j: (i, 0, 0, j)),
                pl.BlockSpec((1, h, w, 1), lambda i, j: (0, 0, 0, 0)),
            ],
            out_specs=pl.BlockSpec((tb, h, w, tc), lambda i, j: (i, 0, 0, j)),
        ),
        compiler_params=pltpu.CompilerParams(
            dimension_semantics=("parallel", "parallel"),
            vmem_limit_bytes=vmem_limit,
        ),
    )(x, inv_cnt)

    if c_pad != orig_c:
        out = out[..., :orig_c]
    return out


def pooling_reference(x):
    """Pure-JAX reference: AvgPool2d(3, stride=1, pad=1, count_include_pad=False)(x) - x."""
    xf = x.astype(jnp.float32)
    window = (1, 3, 3, 1)
    strides = (1, 1, 1, 1)
    s = jax.lax.reduce_window(xf, 0.0, jax.lax.add, window, strides, "SAME")
    cnt = jax.lax.reduce_window(jnp.ones_like(xf), 0.0, jax.lax.add, window, strides, "SAME")
    return (s / cnt - xf).astype(x.dtype)


if __name__ == "__main__":
    key = jax.random.PRNGKey(0)
    k1, k2 = jax.random.split(key)

    # NHWC, as the PyTorch module expects ([B, H, W, C]); C chosen lane-dense (128).
    x1 = jax.random.normal(k1, (2, 16, 16, 128), jnp.float32)
    out1 = jax.block_until_ready(pooling(x1))
    ref1 = pooling_reference(x1)
    assert out1.shape == x1.shape
    assert jnp.allclose(out1, ref1, atol=1e-4, rtol=1e-4), float(jnp.max(jnp.abs(out1 - ref1)))

    # Non-128-multiple channel count exercises the lane-padding / crop path.
    x2 = jax.random.normal(k2, (1, 8, 8, 192), jnp.float32)
    out2 = jax.block_until_ready(pooling(x2))
    ref2 = pooling_reference(x2)
    assert out2.shape == x2.shape
    assert jnp.allclose(out2, ref2, atol=1e-4, rtol=1e-4), float(jnp.max(jnp.abs(out2 - ref2)))

    print("KERNEL_OK")
</pallas_src>

<mosaic_0001>
module attributes {stable_mosaic.version = 11 : i64} {
  func.func @_pooling_kernel(%arg0: i32, %arg1: i32, %arg2: memref<2x16x16x128xf32, #tpu.memory_space<vmem>>, %arg3: memref<1x16x16x1xf32, #tpu.memory_space<vmem>>, %arg4: memref<2x16x16x128xf32, #tpu.memory_space<vmem>>) attributes {dimension_semantics = [#tpu.dimension_semantics<parallel>, #tpu.dimension_semantics<parallel>], iteration_bounds = array<i64: 1, 1>, scalar_prefetch = 0 : i64, scratch_operands = 0 : i64, tpu.core_type = #tpu.core_type<tc>, window_params = [{transform_indices = @transform_0, window_bounds = array<i64: 2, 16, 16, 128>}, {pipeline_mode = #tpu.pipeline_mode<synchronous>, transform_indices = @transform_1, window_bounds = array<i64: 1, 16, 16, 1>}, {transform_indices = @transform_2, window_bounds = array<i64: 2, 16, 16, 128>}]} {
    %c0 = arith.constant 0 : index
    %c0_0 = arith.constant 0 : index
    %c0_1 = arith.constant 0 : index
    %c0_2 = arith.constant 0 : index
    %0 = vector.load %arg2[%c0, %c0_0, %c0_1, %c0_2] : memref<2x16x16x128xf32, #tpu.memory_space<vmem>>, vector<2x16x16x128xf32>
    %c0_3 = arith.constant 0 : index
    %c0_4 = arith.constant 0 : index
    %c0_5 = arith.constant 0 : index
    %c0_6 = arith.constant 0 : index
    %1 = vector.load %arg3[%c0_3, %c0_4, %c0_5, %c0_6] : memref<1x16x16x1xf32, #tpu.memory_space<vmem>>, vector<1x16x16x1xf32>
    %2 = vector.shape_cast %0 : vector<2x16x16x128xf32> to vector<32x16x128xf32>
    %3 = tpu.iota {dimensions = array<i32: 1>} : vector<1x16x128xi32>
    %c0_i32 = arith.constant 0 : i32
    %4 = vector.broadcast %c0_i32 : i32 to vector<1x16x128xi32>
    %5 = arith.cmpi sgt, %3, %4 : vector<1x16x128xi32>
    %c15_i32 = arith.constant 15 : i32
    %6 = vector.broadcast %c15_i32 : i32 to vector<1x16x128xi32>
    %7 = arith.cmpi slt, %3, %6 : vector<1x16x128xi32>
    %8 = arith.andi %5, %7 : vector<1x16x128xi1>
    %cst = arith.constant 0.000000e+00 : f32
    %9 = vector.shape_cast %8 : vector<1x16x128xi1> to vector<1x16x128xi1>
    %10 = vector.broadcast %9 : vector<1x16x128xi1> to vector<32x16x128xi1>
    %11 = vector.broadcast %cst : f32 to vector<32x16x128xf32>
    %12 = arith.select %10, %2, %11 : vector<32x16x128xi1>, vector<32x16x128xf32>
    %c1_i32 = arith.constant 1 : i32
    %13 = tpu.dynamic_rotate %12 by %c1_i32 dim 1 : vector<32x16x128xf32>, i32 -> vector<32x16x128xf32>
    %c15_i32_7 = arith.constant 15 : i32
    %14 = tpu.dynamic_rotate %12 by %c15_i32_7 dim 1 : vector<32x16x128xf32>, i32 -> vector<32x16x128xf32>
    %15 = arith.addf %13, %14 : vector<32x16x128xf32>
    %c1_i32_8 = arith.constant 1 : i32
    %16 = vector.broadcast %c1_i32_8 : i32 to vector<1x16x128xi32>
    %17 = arith.cmpi eq, %3, %16 : vector<1x16x128xi32>
    %18 = vector.extract_strided_slice %2 {offsets = [0, 0, 0], sizes = [32, 1, 128], strides = [1, 1, 1]} : vector<32x16x128xf32> to vector<32x1x128xf32>
    %cst_9 = arith.constant 0.000000e+00 : f32
    %19 = vector.shape_cast %17 : vector<1x16x128xi1> to vector<1x16x128xi1>
    %20 = vector.broadcast %19 : vector<1x16x128xi1> to vector<32x16x128xi1>
    %21 = vector.shape_cast %18 : vector<32x1x128xf32> to vector<32x1x128xf32>
    %22 = vector.broadcast %21 : vector<32x1x128xf32> to vector<32x16x128xf32>
    %23 = vector.broadcast %cst_9 : f32 to vector<32x16x128xf32>
    %24 = arith.select %20, %22, %23 : vector<32x16x128xi1>, vector<32x16x128xf32>
    %25 = arith.addf %15, %24 : vector<32x16x128xf32>
    %c14_i32 = arith.constant 14 : i32
    %26 = vector.broadcast %c14_i32 : i32 to vector<1x16x128xi32>
    %27 = arith.cmpi eq, %3, %26 : vector<1x16x128xi32>
    %28 = vector.extract_strided_slice %2 {offsets = [0, 15, 0], sizes = [32, 1, 128], strides = [1, 1, 1]} : vector<32x16x128xf32> to vector<32x1x128xf32>
    %cst_10 = arith.constant 0.000000e+00 : f32
    %29 = vector.shape_cast %27 : vector<1x16x128xi1> to vector<1x16x128xi1>
    %30 = vector.broadcast %29 : vector<1x16x128xi1> to vector<32x16x128xi1>
    %31 = vector.shape_cast %28 : vector<32x1x128xf32> to vector<32x1x128xf32>
    %32 = vector.broadcast %31 : vector<32x1x128xf32> to vector<32x16x128xf32>
    %33 = vector.broadcast %cst_10 : f32 to vector<32x16x128xf32>
    %34 = arith.select %30, %32, %33 : vector<32x16x128xi1>, vector<32x16x128xf32>
    %35 = arith.addf %25, %34 : vector<32x16x128xf32>
    %36 = arith.addf %2, %35 : vector<32x16x128xf32>
    %37 = vector.shape_cast %36 : vector<32x16x128xf32> to vector<2x16x16x128xf32>
    %38 = vector.extract_strided_slice %37 {offsets = [0, 0, 0, 0], sizes = [2, 14, 16, 128], strides = [1, 1, 1, 1]} : vector<2x16x16x128xf32> to vector<2x14x16x128xf32>
    %39 = vector.extract_strided_slice %37 {offsets = [0, 1, 0, 0], sizes = [2, 14, 16, 128], strides = [1, 1, 1, 1]} : vector<2x16x16x128xf32> to vector<2x14x16x128xf32>
    %40 = arith.addf %38, %39 : vector<2x14x16x128xf32>
    %41 = vector.extract_strided_slice %37 {offsets = [0, 2, 0, 0], sizes = [2, 14, 16, 128], strides = [1, 1, 1, 1]} : vector<2x16x16x128xf32> to vector<2x14x16x128xf32>
    %42 = arith.addf %40, %41 : vector<2x14x16x128xf32>
    %43 = vector.extract_strided_slice %1 {offsets = [0, 1, 0, 0], sizes = [1, 14, 16, 1], strides = [1, 1, 1, 1]} : vector<1x16x16x1xf32> to vector<1x14x16x1xf32>
    %44 = vector.broadcast %43 : vector<1x14x16x1xf32> to vector<2x14x16x128xf32>
    %45 = arith.mulf %42, %44 : vector<2x14x16x128xf32>
    %46 = vector.extract_strided_slice %0 {offsets = [0, 1, 0, 0], sizes = [2, 14, 16, 128], strides = [1, 1, 1, 1]} : vector<2x16x16x128xf32> to vector<2x14x16x128xf32>
    %47 = arith.subf %45, %46 : vector<2x14x16x128xf32>
    %48 = vector.extract_strided_slice %37 {offsets = [0, 0, 0, 0], sizes = [2, 1, 16, 128], strides = [1, 1, 1, 1]} : vector<2x16x16x128xf32> to vector<2x1x16x128xf32>
    %49 = vector.extract_strided_slice %37 {offsets = [0, 1, 0, 0], sizes = [2, 1, 16, 128], strides = [1, 1, 1, 1]} : vector<2x16x16x128xf32> to vector<2x1x16x128xf32>
    %50 = arith.addf %48, %49 : vector<2x1x16x128xf32>
    %51 = vector.extract_strided_slice %1 {offsets = [0, 0, 0, 0], sizes = [1, 1, 16, 1], strides = [1, 1, 1, 1]} : vector<1x16x16x1xf32> to vector<1x1x16x1xf32>
    %52 = vector.broadcast %51 : vector<1x1x16x1xf32> to vector<2x1x16x128xf32>
    %53 = arith.mulf %50, %52 : vector<2x1x16x128xf32>
    %54 = vector.extract_strided_slice %0 {offsets = [0, 0, 0, 0], sizes = [2, 1, 16, 128], strides = [1, 1, 1, 1]} : vector<2x16x16x128xf32> to vector<2x1x16x128xf32>
    %55 = arith.subf %53, %54 : vector<2x1x16x128xf32>
    %56 = vector.extract_strided_slice %37 {offsets = [0, 14, 0, 0], sizes = [2, 1, 16, 128], strides = [1, 1, 1, 1]} : vector<2x16x16x128xf32> to vector<2x1x16x128xf32>
    %57 = vector.extract_strided_slice %37 {offsets = [0, 15, 0, 0], sizes = [2, 1, 16, 128], strides = [1, 1, 1, 1]} : vector<2x16x16x128xf32> to vector<2x1x16x128xf32>
    %58 = arith.addf %56, %57 : vector<2x1x16x128xf32>
    %59 = vector.extract_strided_slice %1 {offsets = [0, 15, 0, 0], sizes = [1, 1, 16, 1], strides = [1, 1, 1, 1]} : vector<1x16x16x1xf32> to vector<1x1x16x1xf32>
    %60 = vector.broadcast %59 : vector<1x1x16x1xf32> to vector<2x1x16x128xf32>
    %61 = arith.mulf %58, %60 : vector<2x1x16x128xf32>
    %62 = vector.extract_strided_slice %0 {offsets = [0, 15, 0, 0], sizes = [2, 1, 16, 128], strides = [1, 1, 1, 1]} : vector<2x16x16x128xf32> to vector<2x1x16x128xf32>
    %63 = arith.subf %61, %62 : vector<2x1x16x128xf32>
    %c0_11 = arith.constant 0 : index
    %c1 = arith.constant 1 : index
    %c0_12 = arith.constant 0 : index
    %c0_13 = arith.constant 0 : index
    %64 = vector.load %arg4[%c0_11, %c1, %c0_12, %c0_13] : memref<2x16x16x128xf32, #tpu.memory_space<vmem>>, vector<2x14x16x128xf32>
    tpu.vector_store %arg4[%c0_11, %c1, %c0_12, %c0_13], %47 {strides = array<i32>} : memref<2x16x16x128xf32, #tpu.memory_space<vmem>>, vector<2x14x16x128xf32>,
    %c0_14 = arith.constant 0 : index
    %c0_15 = arith.constant 0 : index
    %c0_16 = arith.constant 0 : index
    %c0_17 = arith.constant 0 : index
    %65 = vector.load %arg4[%c0_14, %c0_15, %c0_16, %c0_17] : memref<2x16x16x128xf32, #tpu.memory_space<vmem>>, vector<2x1x16x128xf32>
    tpu.vector_store %arg4[%c0_14, %c0_15, %c0_16, %c0_17], %55 {strides = array<i32>} : memref<2x16x16x128xf32, #tpu.memory_space<vmem>>, vector<2x1x16x128xf32>,
    %c0_18 = arith.constant 0 : index
    %c15 = arith.constant 15 : index
    %c0_19 = arith.constant 0 : index
    %c0_20 = arith.constant 0 : index
    %66 = vector.load %arg4[%c0_18, %c15, %c0_19, %c0_20] : memref<2x16x16x128xf32, #tpu.memory_space<vmem>>, vector<2x1x16x128xf32>
    tpu.vector_store %arg4[%c0_18, %c15, %c0_19, %c0_20], %63 {strides = array<i32>} : memref<2x16x16x128xf32, #tpu.memory_space<vmem>>, vector<2x1x16x128xf32>,
    return
  }
  func.func @transform_0(%arg0: i32, %arg1: i32) -> (i32, i32, i32, i32) {
    %c0_i32 = arith.constant 0 : i32
    %c0_i32_0 = arith.constant 0 : i32
    %c0_i32_1 = arith.constant 0 : i32
    return %arg0, %c0_i32, %c0_i32_0, %arg1 : i32, i32, i32, i32
  }
  func.func @transform_1(%arg0: i32, %arg1: i32) -> (i32, i32, i32, i32) {
    %c0_i32 = arith.constant 0 : i32
    %c0_i32_0 = arith.constant 0 : i32
    %c0_i32_1 = arith.constant 0 : i32
    %c0_i32_2 = arith.constant 0 : i32
    %c0_i32_3 = arith.constant 0 : i32
    return %c0_i32, %c0_i32_0, %c0_i32_1, %c0_i32_2 : i32, i32, i32, i32
  }
  func.func @transform_2(%arg0: i32, %arg1: i32) -> (i32, i32, i32, i32) {
    %c0_i32 = arith.constant 0 : i32
    %c0_i32_0 = arith.constant 0 : i32
    %c0_i32_1 = arith.constant 0 : i32
    return %arg0, %c0_i32, %c0_i32_0, %arg1 : i32, i32, i32, i32
  }
}

</mosaic_0001>

<llo_original>
// kernel: tpu_custom_call.1
$region0: #{tpu_custom_call.1}
  #allocation0 [shape = 'u32[]', space=smem, size = 0x4, offset = 0x4, fixed_abs, tag = 'smem constant byte address 0x4 - core index']
  #allocation1 [shape = 'u32[144,128]{1,0:T(1,128)}', space=vmem, size = 0x12000, scoped, tag = 'internal scratch']
  %s0 = inlined_call_operand.hbm [shape: f32[2,16,16,128], index: 0, kind: input, shape index: {}]
  %s1 = inlined_call_operand.vmem [shape: f32[1,16,16,1], index: 1, kind: input, shape index: {}]
  %s2 = inlined_call_operand.hbm [shape: f32[2,16,16,128], index: 2, kind: output, shape index: {}]
  %s3 = sld [smem:[#allocation0]]
  $region22: #{tpu_custom_call.1} parent=0
    _
  %s5 = ssub.s32 1, %s3
  %s6 = scalar_select 0, %s5, %s3
  $region1: #{tpu_custom_call.1} parent=0
    #allocation2 [shape = 'u8[262144]{0}', space=vmem, size = 0x40000, scoped, tag = 'input window, operand 0, single buffered']
    #allocation3 [shape = 's32[1]{0}', space=sflag, size = 0x4, scoped, tag = 'scoped memory for tpu_custom_call.1']
    #allocation4 [shape = 's32[1]{0}', space=sflag, size = 0x4, scoped, tag = 'scoped memory for tpu_custom_call.1']
    #allocation5 [shape = 'u8[262144]{0}', space=vmem, size = 0x40000, scoped, tag = 'output window, operand 0, single buffered']
    %7 = vsyncpa [#allocation3], 0
    %8 = vsyncpa [#allocation4], 0
    // Predicated region
    $region2: #{tpu_custom_call.1} parent=1 // pred_check
      _
    $region3: #{tpu_custom_call.1} parent=1 // pred_check_branch
      %10 = sbr.rel (0) target = $region5
    $region4: #{tpu_custom_call.1} parent=1 // pred_region
      %s12 = ssub.s32 8192, 8192
      %13 = vsyncadd [#allocation3], %s12
      %s14 = sshll.u32 [#allocation2], 4
      %s15 = int_to_ptr.vmem [resolvable:$true] %s14
      %20 = dma.hbm_to_vmem [thread:$0]  %s0, 8192, %s15, [#allocation3], 128, 128, 8
    $region5: #{tpu_custom_call.1} parent=1 // pred_fallthru
      _
    // Predicated region
    $region6: #{tpu_custom_call.1} parent=1 // pred_check
      _
    $region7: #{tpu_custom_call.1} parent=1 // pred_check_branch
      %22 = sbr.rel (0) target = $region9
    $region8: #{tpu_custom_call.1} parent=1 // pred_region
      _
    $region9: #{tpu_custom_call.1} parent=1 // pred_fallthru
      _
    // Predicated region
    $region10: #{tpu_custom_call.1} parent=1 // pred_check
      _
    $region11: #{tpu_custom_call.1} parent=1 // pred_check_branch
      %24 = sbr.rel (0) target = $region13
    $region12: #{tpu_custom_call.1} parent=1 // pred_region
      %25 = dma.done [#allocation3], 8192
    $region13: #{tpu_custom_call.1} parent=1 // pred_fallthru
      _
    %v26 = vld [vmem:[#allocation2] sm:$0xff]
    %v27 = vld [vmem:[#allocation2 + $0x8] sm:$0xff]
    %v28 = vld [vmem:[#allocation2 + $0x10] sm:$0xff]
    %v29 = vld [vmem:[#allocation2 + $0x18] sm:$0xff]
    %v30 = vld [vmem:[#allocation2 + $0x20] sm:$0xff]
    %v31 = vld [vmem:[#allocation2 + $0x28] sm:$0xff]
    %v32 = vld [vmem:[#allocation2 + $0x30] sm:$0xff]
    %v33 = vld [vmem:[#allocation2 + $0x38] sm:$0xff]
    %v34 = vld [vmem:[#allocation2 + $0x40] sm:$0xff]
    %v35 = vld [vmem:[#allocation2 + $0x48] sm:$0xff]
    %v36 = vld [vmem:[#allocation2 + $0x50] sm:$0xff]
    %v37 = vld [vmem:[#allocation2 + $0x58] sm:$0xff]
    %v38 = vld [vmem:[#allocation2 + $0x60] sm:$0xff]
    %v39 = vld [vmem:[#allocation2 + $0x68] sm:$0xff]
    %v40 = vld [vmem:[#allocation2 + $0x70] sm:$0xff]
    %v41 = vld [vmem:[#allocation2 + $0x78] sm:$0xff]
    %v42 = vld [vmem:[#allocation2 + $0x80] sm:$0xff]
    %v43 = vld [vmem:[#allocation2 + $0x88] sm:$0xff]
    %v44 = vld [vmem:[#allocation2 + $0x90] sm:$0xff]
    %v45 = vld [vmem:[#allocation2 + $0x98] sm:$0xff]
    %v46 = vld [vmem:[#allocation2 + $0xa0] sm:$0xff]
    %v47 = vld [vmem:[#allocation2 + $0xa8] sm:$0xff]
    %v48 = vld [vmem:[#allocation2 + $0xb0] sm:$0xff]
    %v49 = vld [vmem:[#allocation2 + $0xb8] sm:$0xff]
    %v50 = vld [vmem:[#allocation2 + $0xc0] sm:$0xff]
    %v51 = vld [vmem:[#allocation2 + $0xc8] sm:$0xff]
    %v52 = vld [vmem:[#allocation2 + $0xd0] sm:$0xff]
    %v53 = vld [vmem:[#allocation2 + $0xd8] sm:$0xff]
    %v54 = vld [vmem:[#allocation2 + $0xe0] sm:$0xff]
    %v55 = vld [vmem:[#allocation2 + $0xe8] sm:$0xff]
    %v56 = vld [vmem:[#allocation2 + $0xf0] sm:$0xff]
    %v57 = vld [vmem:[#allocation2 + $0xf8] sm:$0xff]
    %v58 = vld [vmem:[#allocation2 + $0x100] sm:$0xff]
    %v59 = vld [vmem:[#allocation2 + $0x108] sm:$0xff]
    %v60 = vld [vmem:[#allocation2 + $0x110] sm:$0xff]
    %v61 = vld [vmem:[#allocation2 + $0x118] sm:$0xff]
    %v62 = vld [vmem:[#allocation2 + $0x120] sm:$0xff]
    %v63 = vld [vmem:[#allocation2 + $0x128] sm:$0xff]
    %v64 = vld [vmem:[#allocation2 + $0x130] sm:$0xff]
    %v65 = vld [vmem:[#allocation2 + $0x138] sm:$0xff]
    %v66 = vld [vmem:[#allocation2 + $0x140] sm:$0xff]
    %v67 = vld [vmem:[#allocation2 + $0x148] sm:$0xff]
    %v68 = vld [vmem:[#allocation2 + $0x150] sm:$0xff]
    %v69 = vld [vmem:[#allocation2 + $0x158] sm:$0xff]
    %v70 = vld [vmem:[#allocation2 + $0x160] sm:$0xff]
    %v71 = vld [vmem:[#allocation2 + $0x168] sm:$0xff]
    %v72 = vld [vmem:[#allocation2 + $0x170] sm:$0xff]
    %v73 = vld [vmem:[#allocation2 + $0x178] sm:$0xff]
    %v74 = vld [vmem:[#allocation2 + $0x180] sm:$0xff]
    %v75 = vld [vmem:[#allocation2 + $0x188] sm:$0xff]
    %v76 = vld [vmem:[#allocation2 + $0x190] sm:$0xff]
    %v77 = vld [vmem:[#allocation2 + $0x198] sm:$0xff]
    %v78 = vld [vmem:[#allocation2 + $0x1a0] sm:$0xff]
    %v79 = vld [vmem:[#allocation2 + $0x1a8] sm:$0xff]
    %v80 = vld [vmem:[#allocation2 + $0x1b0] sm:$0xff]
    %v81 = vld [vmem:[#allocation2 + $0x1b8] sm:$0xff]
    %v82 = vld [vmem:[#allocation2 + $0x1c0] sm:$0xff]
    %v83 = vld [vmem:[#allocation2 + $0x1c8] sm:$0xff]
    %v84 = vld [vmem:[#allocation2 + $0x1d0] sm:$0xff]
    %v85 = vld [vmem:[#allocation2 + $0x1d8] sm:$0xff]
    %v86 = vld [vmem:[#allocation2 + $0x1e0] sm:$0xff]
    %v87 = vld [vmem:[#allocation2 + $0x1e8] sm:$0xff]
    %v88 = vld [vmem:[#allocation2 + $0x1f0] sm:$0xff]
    %v89 = vld [vmem:[#allocation2 + $0x1f8] sm:$0xff]
    %v90 = vld [vmem:[%s1] sm:$0xff]
    %v91 = vld [vmem:[%s1 + $0x8] sm:$0xff]
    %v92 = vld [vmem:[%s1 + $0x10] sm:$0xff]
    %v93 = vld [vmem:[%s1 + $0x18] sm:$0xff]
    %v94 = vld [vmem:[%s1 + $0x20] sm:$0xff]
    %v95 = vld [vmem:[%s1 + $0x28] sm:$0xff]
    %v96 = vld [vmem:[%s1 + $0x30] sm:$0xff]
    %v97 = vld [vmem:[%s1 + $0x38] sm:$0xff]
    %v98 = vld [vmem:[%s1 + $0x40] sm:$0xff]
    %v99 = vld [vmem:[%s1 + $0x48] sm:$0xff]
    %v100 = vld [vmem:[%s1 + $0x50] sm:$0xff]
    %v101 = vld [vmem:[%s1 + $0x58] sm:$0xff]
    %v102 = vld [vmem:[%s1 + $0x60] sm:$0xff]
    %v103 = vld [vmem:[%s1 + $0x68] sm:$0xff]
    %v104 = vld [vmem:[%s1 + $0x70] sm:$0xff]
    %v105 = vld [vmem:[%s1 + $0x78] sm:$0xff]
    %v106 = vld [vmem:[%s1 + $0x80] sm:$0xff]
    %v107 = vld [vmem:[%s1 + $0x88] sm:$0xff]
    %v108 = vld [vmem:[%s1 + $0x90] sm:$0xff]
    %v109 = vld [vmem:[%s1 + $0x98] sm:$0xff]
    %v110 = vld [vmem:[%s1 + $0xa0] sm:$0xff]
    %v111 = vld [vmem:[%s1 + $0xa8] sm:$0xff]
    %v112 = vld [vmem:[%s1 + $0xb0] sm:$0xff]
    %v113 = vld [vmem:[%s1 + $0xb8] sm:$0xff]
    %v114 = vld [vmem:[%s1 + $0xc0] sm:$0xff]
    %v115 = vld [vmem:[%s1 + $0xc8] sm:$0xff]
    %v116 = vld [vmem:[%s1 + $0xd0] sm:$0xff]
    %v117 = vld [vmem:[%s1 + $0xd8] sm:$0xff]
    %v118 = vld [vmem:[%s1 + $0xe0] sm:$0xff]
    %v119 = vld [vmem:[%s1 + $0xe8] sm:$0xff]
    %v120 = vld [vmem:[%s1 + $0xf0] sm:$0xff]
    %v121 = vld [vmem:[%s1 + $0xf8] sm:$0xff]
    %v122 = vlaneseq
    %v123 = vshrl.u32 %v122, 7
    %v124 = vadd.s32 %v123, 8
    %vm125 = vcmp.gt.s32.totalorder %v123, 0
    %vm126 = vcmp.gt.s32.totalorder %v124, 0
    %vm127 = vcmp.lt.s32.totalorder %v123, 15
    %vm128 = vcmp.lt.s32.totalorder %v124, 15
    %vm129 = vmand %vm125, %vm127
    %vm130 = vmand %vm126, %vm128
    %v131 = vsel %vm129, 1, 0
    %v132 = vsel %vm130, 1, 0
    %vm133 = vcmp.eq.s32.totalorder %v131, 1
    %vm134 = vcmp.eq.s32.totalorder %v132, 1
    %v135 = vsel %vm133, %v26, 0.0
    %v136 = vsel %vm134, %v27, 0.0
    %v137 = vsel %vm133, %v28, 0.0
    %v138 = vsel %vm134, %v29, 0.0
    %v139 = vsel %vm133, %v30, 0.0
    %v140 = vsel %vm134, %v31, 0.0
    %v141 = vsel %vm133, %v32, 0.0
    %v142 = vsel %vm134, %v33, 0.0
    %v143 = vsel %vm133, %v34, 0.0
    %v144 = vsel %vm134, %v35, 0.0
    %v145 = vsel %vm133, %v36, 0.0
    %v146 = vsel %vm134, %v37, 0.0
    %v147 = vsel %vm133, %v38, 0.0
    %v148 = vsel %vm134, %v39, 0.0
    %v149 = vsel %vm133, %v40, 0.0
    %v150 = vsel %vm134, %v41, 0.0
    %v151 = vsel %vm133, %v42, 0.0
    %v152 = vsel %vm134, %v43, 0.0
    %v153 = vsel %vm133, %v44, 0.0
    %v154 = vsel %vm134, %v45, 0.0
    %v155 = vsel %vm133, %v46, 0.0
    %v156 = vsel %vm134, %v47, 0.0
    %v157 = vsel %vm133, %v48, 0.0
    %v158 = vsel %vm134, %v49, 0.0
    %v159 = vsel %vm133, %v50, 0.0
    %v160 = vsel %vm134, %v51, 0.0
    %v161 = vsel %vm133, %v52, 0.0
    %v162 = vsel %vm134, %v53, 0.0
    %v163 = vsel %vm133, %v54, 0.0
    %v164 = vsel %vm134, %v55, 0.0
    %v165 = vsel %vm133, %v56, 0.0
    %v166 = vsel %vm134, %v57, 0.0
    %v167 = vsel %vm133, %v58, 0.0
    %v168 = vsel %vm134, %v59, 0.0
    %v169 = vsel %vm133, %v60, 0.0
    %v170 = vsel %vm134, %v61, 0.0
    %v171 = vsel %vm133, %v62, 0.0
    %v172 = vsel %vm134, %v63, 0.0
    %v173 = vsel %vm133, %v64, 0.0
    %v174 = vsel %vm134, %v65, 0.0
    %v175 = vsel %vm133, %v66, 0.0
    %v176 = vsel %vm134, %v67, 0.0
    %v177 = vsel %vm133, %v68, 0.0
    %v178 = vsel %vm134, %v69, 0.0
    %v179 = vsel %vm133, %v70, 0.0
    %v180 = vsel %vm134, %v71, 0.0
    %v181 = vsel %vm133, %v72, 0.0
    %v182 = vsel %vm134, %v73, 0.0
    %v183 = vsel %vm133, %v74, 0.0
    %v184 = vsel %vm134, %v75, 0.0
    %v185 = vsel %vm133, %v76, 0.0
    %v186 = vsel %vm134, %v77, 0.0
    %v187 = vsel %vm133, %v78, 0.0
    %v188 = vsel %vm134, %v79, 0.0
    %v189 = vsel %vm133, %v80, 0.0
    %v190 = vsel %vm134, %v81, 0.0
    %v191 = vsel %vm133, %v82, 0.0
    %v192 = vsel %vm134, %v83, 0.0
    %v193 = vsel %vm133, %v84, 0.0
    %v194 = vsel %vm134, %v85, 0.0
    %v195 = vsel %vm133, %v86, 0.0
    %v196 = vsel %vm134, %v87, 0.0
    %v197 = vsel %vm133, %v88, 0.0
    %v198 = vsel %vm134, %v89, 0.0
    %v199 = vrot.slane %v135, 7
    %v200 = vrot.slane %v137, 7
    %v201 = vrot.slane %v139, 7
    %v202 = vrot.slane %v141, 7
    %v203 = vrot.slane %v143, 7
    %v204 = vrot.slane %v145, 7
    %v205 = vrot.slane %v147, 7
    %v206 = vrot.slane %v149, 7
    %v207 = vrot.slane %v151, 7
    %v208 = vrot.slane %v153, 7
    %v209 = vrot.slane %v155, 7
    %v210 = vrot.slane %v157, 7
    %v211 = vrot.slane %v159, 7
    %v212 = vrot.slane %v161, 7
    %v213 = vrot.slane %v163, 7
    %v214 = vrot.slane %v165, 7
    %v215 = vrot.slane %v167, 7
    %v216 = vrot.slane %v169, 7
    %v217 = vrot.slane %v171, 7
    %v218 = vrot.slane %v173, 7
    %v219 = vrot.slane %v175, 7
    %v220 = vrot.slane %v177, 7
    %v221 = vrot.slane %v179, 7
    %v222 = vrot.slane %v181, 7
    %v223 = vrot.slane %v183, 7
    %v224 = vrot.slane %v185, 7
    %v225 = vrot.slane %v187, 7
    %v226 = vrot.slane %v189, 7
    %v227 = vrot.slane %v191, 7
    %v228 = vrot.slane %v193, 7
    %v229 = vrot.slane %v195, 7
    %v230 = vrot.slane %v197, 7
    %v231 = vrot.slane %v136, 7
    %v232 = vrot.slane %v138, 7
    %v233 = vrot.slane %v140, 7
    %v234 = vrot.slane %v142, 7
    %v235 = vrot.slane %v144, 7
    %v236 = vrot.slane %v146, 7
    %v237 = vrot.slane %v148, 7
    %v238 = vrot.slane %v150, 7
    %v239 = vrot.slane %v152, 7
    %v240 = vrot.slane %v154, 7
    %v241 = vrot.slane %v156, 7
    %v242 = vrot.slane %v158, 7
    %v243 = vrot.slane %v160, 7
    %v244 = vrot.slane %v162, 7
    %v245 = vrot.slane %v164, 7
    %v246 = vrot.slane %v166, 7
    %v247 = vrot.slane %v168, 7
    %v248 = vrot.slane %v170, 7
    %v249 = vrot.slane %v172, 7
    %v250 = vrot.slane %v174, 7
    %v251 = vrot.slane %v176, 7
    %v252 = vrot.slane %v178, 7
    %v253 = vrot.slane %v180, 7
    %v254 = vrot.slane %v182, 7
    %v255 = vrot.slane %v184, 7
    %v256 = vrot.slane %v186, 7
    %v257 = vrot.slane %v188, 7
    %v258 = vrot.slane %v190, 7
    %v259 = vrot.slane %v192, 7
    %v260 = vrot.slane %v194, 7
    %v261 = vrot.slane %v196, 7
    %v262 = vrot.slane %v198, 7
    %vm263 = vcmp.lt.s32.totalorder %v123, 1
    %v264 = vsel %vm263, %v199, %v231
    %v265 = vsel %vm263, %v200, %v232
    %v266 = vsel %vm263, %v201, %v233
    %v267 = vsel %vm263, %v202, %v234
    %v268 = vsel %vm263, %v203, %v235
    %v269 = vsel %vm263, %v204, %v236
    %v270 = vsel %vm263, %v205, %v237
    %v271 = vsel %vm263, %v206, %v238
    %v272 = vsel %vm263, %v207, %v239
    %v273 = vsel %vm263, %v208, %v240
    %v274 = vsel %vm263, %v209, %v241
    %v275 = vsel %vm263, %v210, %v242
    %v276 = vsel %vm263, %v211, %v243
    %v277 = vsel %vm263, %v212, %v244
    %v278 = vsel %vm263, %v213, %v245
    %v279 = vsel %vm263, %v214, %v246
    %v280 = vsel %vm263, %v215, %v247
    %v281 = vsel %vm263, %v216, %v248
    %v282 = vsel %vm263, %v217, %v249
    %v283 = vsel %vm263, %v218, %v250
    %v284 = vsel %vm263, %v219, %v251
    %v285 = vsel %vm263, %v220, %v252
    %v286 = vsel %vm263, %v221, %v253
    %v287 = vsel %vm263, %v222, %v254
    %v288 = vsel %vm263, %v223, %v255
    %v289 = vsel %vm263, %v224, %v256
    %v290 = vsel %vm263, %v225, %v257
    %v291 = vsel %vm263, %v226, %v258
    %v292 = vsel %vm263, %v227, %v259
    %v293 = vsel %vm263, %v228, %v260
    %v294 = vsel %vm263, %v229, %v261
    %v295 = vsel %vm263, %v230, %v262
    %v296 = vsel %vm263, %v231, %v199
    %v297 = vsel %vm263, %v232, %v200
    %v298 = vsel %vm263, %v233, %v201
    %v299 = vsel %vm263, %v234, %v202
    %v300 = vsel %vm263, %v235, %v203
    %v301 = vsel %vm263, %v236, %v204
    %v302 = vsel %vm263, %v237, %v205
    %v303 = vsel %vm263, %v238, %v206
    %v304 = vsel %vm263, %v239, %v207
    %v305 = vsel %vm263, %v240, %v208
    %v306 = vsel %vm263, %v241, %v209
    %v307 = vsel %vm263, %v242, %v210
    %v308 = vsel %vm263, %v243, %v211
    %v309 = vsel %vm263, %v244, %v212
    %v310 = vsel %vm263, %v245, %v213
    %v311 = vsel %vm263, %v246, %v214
    %v312 = vsel %vm263, %v247, %v215
    %v313 = vsel %vm263, %v248, %v216
    %v314 = vsel %vm263, %v249, %v217
    %v315 = vsel %vm263, %v250, %v218
    %v316 = vsel %vm263, %v251, %v219
    %v317 = vsel %vm263, %v252, %v220
    %v318 = vsel %vm263, %v253, %v221
    %v319 = vsel %vm263, %v254, %v222
    %v320 = vsel %vm263, %v255, %v223
    %v321 = vsel %vm263, %v256, %v224
    %v322 = vsel %vm263, %v257, %v225
    %v323 = vsel %vm263, %v258, %v226
    %v324 = vsel %vm263, %v259, %v227
    %v325 = vsel %vm263, %v260, %v228
    %v326 = vsel %vm263, %v261, %v229
    %v327 = vsel %vm263, %v262, %v230
    %v328 = vrot.slane %v135, 1
    %v329 = vrot.slane %v137, 1
    %v330 = vrot.slane %v139, 1
    %v331 = vrot.slane %v141, 1
    %v332 = vrot.slane %v143, 1
    %v333 = vrot.slane %v145, 1
    %v334 = vrot.slane %v147, 1
    %v335 = vrot.slane %v149, 1
    %v336 = vrot.slane %v151, 1
    %v337 = vrot.slane %v153, 1
    %v338 = vrot.slane %v155, 1
    %v339 = vrot.slane %v157, 1
    %v340 = vrot.slane %v159, 1
    %v341 = vrot.slane %v161, 1
    %v342 = vrot.slane %v163, 1
    %v343 = vrot.slane %v165, 1
    %v344 = vrot.slane %v167, 1
    %v345 = vrot.slane %v169, 1
    %v346 = vrot.slane %v171, 1
    %v347 = vrot.slane %v173, 1
    %v348 = vrot.slane %v175, 1
    %v349 = vrot.slane %v177, 1
    %v350 = vrot.slane %v179, 1
    %v351 = vrot.slane %v181, 1
    %v352 = vrot.slane %v183, 1
    %v353 = vrot.slane %v185, 1
    %v354 = vrot.slane %v187, 1
    %v355 = vrot.slane %v189, 1
    %v356 = vrot.slane %v191, 1
    %v357 = vrot.slane %v193, 1
    %v358 = vrot.slane %v195, 1
    %v359 = vrot.slane %v197, 1
    %v360 = vrot.slane %v136, 1
    %v361 = vrot.slane %v138, 1
    %v362 = vrot.slane %v140, 1
    %v363 = vrot.slane %v142, 1
    %v364 = vrot.slane %v144, 1
    %v365 = vrot.slane %v146, 1
    %v366 = vrot.slane %v148, 1
    %v367 = vrot.slane %v150, 1
    %v368 = vrot.slane %v152, 1
    %v369 = vrot.slane %v154, 1
    %v370 = vrot.slane %v156, 1
    %v371 = vrot.slane %v158, 1
    %v372 = vrot.slane %v160, 1
    %v373 = vrot.slane %v162, 1
    %v374 = vrot.slane %v164, 1
    %v375 = vrot.slane %v166, 1
    %v376 = vrot.slane %v168, 1
    %v377 = vrot.slane %v170, 1
    %v378 = vrot.slane %v172, 1
    %v379 = vrot.slane %v174, 1
    %v380 = vrot.slane %v176, 1
    %v381 = vrot.slane %v178, 1
    %v382 = vrot.slane %v180, 1
    %v383 = vrot.slane %v182, 1
    %v384 = vrot.slane %v184, 1
    %v385 = vrot.slane %v186, 1
    %v386 = vrot.slane %v188, 1
    %v387 = vrot.slane %v190, 1
    %v388 = vrot.slane %v192, 1
    %v389 = vrot.slane %v194, 1
    %v390 = vrot.slane %v196, 1
    %v391 = vrot.slane %v198, 1
    %vm392 = vcmp.lt.s32.totalorder %v123, 7
    %v393 = vsel %vm392, %v328, %v360
    %v394 = vsel %vm392, %v329, %v361
    %v395 = vsel %vm392, %v330, %v362
    %v396 = vsel %vm392, %v331, %v363
    %v397 = vsel %vm392, %v332, %v364
    %v398 = vsel %vm392, %v333, %v365
    %v399 = vsel %vm392, %v334, %v366
    %v400 = vsel %vm392, %v335, %v367
    %v401 = vsel %vm392, %v336, %v368
    %v402 = vsel %vm392, %v337, %v369
    %v403 = vsel %vm392, %v338, %v370
    %v404 = vsel %vm392, %v339, %v371
    %v405 = vsel %vm392, %v340, %v372
    %v406 = vsel %vm392, %v341, %v373
    %v407 = vsel %vm392, %v342, %v374
    %v408 = vsel %vm392, %v343, %v375
    %v409 = vsel %vm392, %v344, %v376
    %v410 = vsel %vm392, %v345, %v377
    %v411 = vsel %vm392, %v346, %v378
    %v412 = vsel %vm392, %v347, %v379
    %v413 = vsel %vm392, %v348, %v380
    %v414 = vsel %vm392, %v349, %v381
    %v415 = vsel %vm392, %v350, %v382
    %v416 = vsel %vm392, %v351, %v383
    %v417 = vsel %vm392, %v352, %v384
    %v418 = vsel %vm392, %v353, %v385
    %v419 = vsel %vm392, %v354, %v386
    %v420 = vsel %vm392, %v355, %v387
    %v421 = vsel %vm392, %v356, %v388
    %v422 = vsel %vm392, %v357, %v389
    %v423 = vsel %vm392, %v358, %v390
    %v424 = vsel %vm392, %v359, %v391
    %v425 = vsel %vm392, %v360, %v328
    %v426 = vsel %vm392, %v361, %v329
    %v427 = vsel %vm392, %v362, %v330
    %v428 = vsel %vm392, %v363, %v331
    %v429 = vsel %vm392, %v364, %v332
    %v430 = vsel %vm392, %v365, %v333
    %v431 = vsel %vm392, %v366, %v334
    %v432 = vsel %vm392, %v367, %v335
    %v433 = vsel %vm392, %v368, %v336
    %v434 = vsel %vm392, %v369, %v337
    %v435 = vsel %vm392, %v370, %v338
    %v436 = vsel %vm392, %v371, %v339
    %v437 = vsel %vm392, %v372, %v340
    %v438 = vsel %vm392, %v373, %v341
    %v439 = vsel %vm392, %v374, %v342
    %v440 = vsel %vm392, %v375, %v343
    %v441 = vsel %vm392, %v376, %v344
    %v442 = vsel %vm392, %v377, %v345
    %v443 = vsel %vm392, %v378, %v346
    %v444 = vsel %vm392, %v379, %v347
    %v445 = vsel %vm392, %v380, %v348
    %v446 = vsel %vm392, %v381, %v349
    %v447 = vsel %vm392, %v382, %v350
    %v448 = vsel %vm392, %v383, %v351
    %v449 = vsel %vm392, %v384, %v352
    %v450 = vsel %vm392, %v385, %v353
    %v451 = vsel %vm392, %v386, %v354
    %v452 = vsel %vm392, %v387, %v355
    %v453 = vsel %vm392, %v388, %v356
    %v454 = vsel %vm392, %v389, %v357
    %v455 = vsel %vm392, %v390, %v358
    %v456 = vsel %vm392, %v391, %v359
    %v457 = vadd.f32 %v296, %v393
    %v458 = vadd.f32 %v264, %v425
    %v459 = vadd.f32 %v297, %v394
    %v460 = vadd.f32 %v265, %v426
    %v461 = vadd.f32 %v298, %v395
    %v462 = vadd.f32 %v266, %v427
    %v463 = vadd.f32 %v299, %v396
    %v464 = vadd.f32 %v267, %v428
    %v465 = vadd.f32 %v300, %v397
    %v466 = vadd.f32 %v268, %v429
    %v467 = vadd.f32 %v301, %v398
    %v468 = vadd.f32 %v269, %v430
    %v469 = vadd.f32 %v302, %v399
    %v470 = vadd.f32 %v270, %v431
    %v471 = vadd.f32 %v303, %v400
    %v472 = vadd.f32 %v271, %v432
    %v473 = vadd.f32 %v304, %v401
    %v474 = vadd.f32 %v272, %v433
    %v475 = vadd.f32 %v305, %v402
    %v476 = vadd.f32 %v273, %v434
    %v477 = vadd.f32 %v306, %v403
    %v478 = vadd.f32 %v274, %v435
    %v479 = vadd.f32 %v307, %v404
    %v480 = vadd.f32 %v275, %v436
    %v481 = vadd.f32 %v308, %v405
    %v482 = vadd.f32 %v276, %v437
    %v483 = vadd.f32 %v309, %v406
    %v484 = vadd.f32 %v277, %v438
    %v485 = vadd.f32 %v310, %v407
    %v486 = vadd.f32 %v278, %v439
    %v487 = vadd.f32 %v311, %v408
    %v488 = vadd.f32 %v279, %v440
    %v489 = vadd.f32 %v312, %v409
    %v490 = vadd.f32 %v280, %v441
    %v491 = vadd.f32 %v313, %v410
    %v492 = vadd.f32 %v281, %v442
    %v493 = vadd.f32 %v314, %v411
    %v494 = vadd.f32 %v282, %v443
    %v495 = vadd.f32 %v315, %v412
    %v496 = vadd.f32 %v283, %v444
    %v497 = vadd.f32 %v316, %v413
    %v498 = vadd.f32 %v284, %v445
    %v499 = vadd.f32 %v317, %v414
    %v500 = vadd.f32 %v285, %v446
    %v501 = vadd.f32 %v318, %v415
    %v502 = vadd.f32 %v286, %v447
    %v503 = vadd.f32 %v319, %v416
    %v504 = vadd.f32 %v287, %v448
    %v505 = vadd.f32 %v320, %v417
    %v506 = vadd.f32 %v288, %v449
    %v507 = vadd.f32 %v321, %v418
    %v508 = vadd.f32 %v289, %v450
    %v509 = vadd.f32 %v322, %v419
    %v510 = vadd.f32 %v290, %v451
    %v511 = vadd.f32 %v323, %v420
    %v512 = vadd.f32 %v291, %v452
    %v513 = vadd.f32 %v324, %v421
    %v514 = vadd.f32 %v292, %v453
    %v515 = vadd.f32 %v325, %v422
    %v516 = vadd.f32 %v293, %v454
    %v517 = vadd.f32 %v326, %v423
    %v518 = vadd.f32 %v294, %v455
    %v519 = vadd.f32 %v327, %v424
    %v520 = vadd.f32 %v295, %v456
    %vm521 = vcmp.eq.s32.totalorder %v123, 1
    %vm522 = vcmp.eq.s32.totalorder %v124, 1
    %v523 = vsel %vm521, 1, 0
    %v524 = vsel %vm522, 1, 0
    %vm525 = vcmp.eq.s32.totalorder %v523, 1
    %vm526 = vcmp.eq.s32.totalorder %v524, 1
    %v527 = vlaneseq
    %v528 = vshrl.u32 %v527, 7
    %v529 = vsub.s32 0, %v528
    %v530 = vrot.slane %v26, %v529
    %v531 = vlaneseq
    %v532 = vshrl.u32 %v531, 7
    %v533 = vsub.s32 0, %v532
    %v534 = vrot.slane %v28, %v533
    %v535 = vlaneseq
    %v536 = vshrl.u32 %v535, 7
    %v537 = vsub.s32 0, %v536
    %v538 = vrot.slane %v30, %v537
    %v539 = vlaneseq
    %v540 = vshrl.u32 %v539, 7
    %v541 = vsub.s32 0, %v540
    %v542 = vrot.slane %v32, %v541
    %v543 = vlaneseq
    %v544 = vshrl.u32 %v543, 7
    %v545 = vsub.s32 0, %v544
    %v546 = vrot.slane %v34, %v545
    %v547 = vlaneseq
    %v548 = vshrl.u32 %v547, 7
    %v549 = vsub.s32 0, %v548
    %v550 = vrot.slane %v36, %v549
    %v551 = vlaneseq
    %v552 = vshrl.u32 %v551, 7
    %v553 = vsub.s32 0, %v552
    %v554 = vrot.slane %v38, %v553
    %v555 = vlaneseq
    %v556 = vshrl.u32 %v555, 7
    %v557 = vsub.s32 0, %v556
    %v558 = vrot.slane %v40, %v557
    %v559 = vlaneseq
    %v560 = vshrl.u32 %v559, 7
    %v561 = vsub.s32 0, %v560
    %v562 = vrot.slane %v42, %v561
    %v563 = vlaneseq
    %v564 = vshrl.u32 %v563, 7
    %v565 = vsub.s32 0, %v564
    %v566 = vrot.slane %v44, %v565
    %v567 = vlaneseq
    %v568 = vshrl.u32 %v567, 7
    %v569 = vsub.s32 0, %v568
    %v570 = vrot.slane %v46, %v569
    %v571 = vlaneseq
    %v572 = vshrl.u32 %v571, 7
    %v573 = vsub.s32 0, %v572
    %v574 = vrot.slane %v48, %v573
    %v575 = vlaneseq
    %v576 = vshrl.u32 %v575, 7
    %v577 = vsub.s32 0, %v576
    %v578 = vrot.slane %v50, %v577
    %v579 = vlaneseq
    %v580 = vshrl.u32 %v579, 7
    %v581 = vsub.s32 0, %v580
    %v582 = vrot.slane %v52, %v581
    %v583 = vlaneseq
    %v584 = vshrl.u32 %v583, 7
    %v585 = vsub.s32 0, %v584
    %v586 = vrot.slane %v54, %v585
    %v587 = vlaneseq
    %v588 = vshrl.u32 %v587, 7
    %v589 = vsub.s32 0, %v588
    %v590 = vrot.slane %v56, %v589
    %v591 = vlaneseq
    %v592 = vshrl.u32 %v591, 7
    %v593 = vsub.s32 0, %v592
    %v594 = vrot.slane %v58, %v593
    %v595 = vlaneseq
    %v596 = vshrl.u32 %v595, 7
    %v597 = vsub.s32 0, %v596
    %v598 = vrot.slane %v60, %v597
    %v599 = vlaneseq
    %v600 = vshrl.u32 %v599, 7
    %v601 = vsub.s32 0, %v600
    %v602 = vrot.slane %v62, %v601
    %v603 = vlaneseq
    %v604 = vshrl.u32 %v603, 7
    %v605 = vsub.s32 0, %v604
    %v606 = vrot.slane %v64, %v605
    %v607 = vlaneseq
    %v608 = vshrl.u32 %v607, 7
    %v609 = vsub.s32 0, %v608
    %v610 = vrot.slane %v66, %v609
    %v611 = vlaneseq
    %v612 = vshrl.u32 %v611, 7
    %v613 = vsub.s32 0, %v612
    %v614 = vrot.slane %v68, %v613
    %v615 = vlaneseq
    %v616 = vshrl.u32 %v615, 7
    %v617 = vsub.s32 0, %v616
    %v618 = vrot.slane %v70, %v617
    %v619 = vlaneseq
    %v620 = vshrl.u32 %v619, 7
    %v621 = vsub.s32 0, %v620
    %v622 = vrot.slane %v72, %v621
    %v623 = vlaneseq
    %v624 = vshrl.u32 %v623, 7
    %v625 = vsub.s32 0, %v624
    %v626 = vrot.slane %v74, %v625
    %v627 = vlaneseq
    %v628 = vshrl.u32 %v627, 7
    %v629 = vsub.s32 0, %v628
    %v630 = vrot.slane %v76, %v629
    %v631 = vlaneseq
    %v632 = vshrl.u32 %v631, 7
    %v633 = vsub.s32 0, %v632
    %v634 = vrot.slane %v78, %v633
    %v635 = vlaneseq
    %v636 = vshrl.u32 %v635, 7
    %v637 = vsub.s32 0, %v636
    %v638 = vrot.slane %v80, %v637
    %v639 = vlaneseq
    %v640 = vshrl.u32 %v639, 7
    %v641 = vsub.s32 0, %v640
    %v642 = vrot.slane %v82, %v641
    %v643 = vlaneseq
    %v644 = vshrl.u32 %v643, 7
    %v645 = vsub.s32 0, %v644
    %v646 = vrot.slane %v84, %v645
    %v647 = vlaneseq
    %v648 = vshrl.u32 %v647, 7
    %v649 = vsub.s32 0, %v648
    %v650 = vrot.slane %v86, %v649
    %v651 = vlaneseq
    %v652 = vshrl.u32 %v651, 7
    %v653 = vsub.s32 0, %v652
    %v654 = vrot.slane %v88, %v653
    %v655 = vsel %vm525, %v530, 0.0
    %v656 = vsel %vm526, %v530, 0.0
    %v657 = vsel %vm525, %v534, 0.0
    %v658 = vsel %vm526, %v534, 0.0
    %v659 = vsel %vm525, %v538, 0.0
    %v660 = vsel %vm526, %v538, 0.0
    %v661 = vsel %vm525, %v542, 0.0
    %v662 = vsel %vm526, %v542, 0.0
    %v663 = vsel %vm525, %v546, 0.0
    %v664 = vsel %vm526, %v546, 0.0
    %v665 = vsel %vm525, %v550, 0.0
    %v666 = vsel %vm526, %v550, 0.0
    %v667 = vsel %vm525, %v554, 0.0
    %v668 = vsel %vm526, %v554, 0.0
    %v669 = vsel %vm525, %v558, 0.0
    %v670 = vsel %vm526, %v558, 0.0
    %v671 = vsel %vm525, %v562, 0.0
    %v672 = vsel %vm526, %v562, 0.0
    %v673 = vsel %vm525, %v566, 0.0
    %v674 = vsel %vm526, %v566, 0.0
    %v675 = vsel %vm525, %v570, 0.0
    %v676 = vsel %vm526, %v570, 0.0
    %v677 = vsel %vm525, %v574, 0.0
    %v678 = vsel %vm526, %v574, 0.0
    %v679 = vsel %vm525, %v578, 0.0
    %v680 = vsel %vm526, %v578, 0.0
    %v681 = vsel %vm525, %v582, 0.0
    %v682 = vsel %vm526, %v582, 0.0
    %v683 = vsel %vm525, %v586, 0.0
    %v684 = vsel %vm526, %v586, 0.0
    %v685 = vsel %vm525, %v590, 0.0
    %v686 = vsel %vm526, %v590, 0.0
    %v687 = vsel %vm525, %v594, 0.0
    %v688 = vsel %vm526, %v594, 0.0
    %v689 = vsel %vm525, %v598, 0.0
    %v690 = vsel %vm526, %v598, 0.0
    %v691 = vsel %vm525, %v602, 0.0
    %v692 = vsel %vm526, %v602, 0.0
    %v693 = vsel %vm525, %v606, 0.0
    %v694 = vsel %vm526, %v606, 0.0
    %v695 = vsel %vm525, %v610, 0.0
    %v696 = vsel %vm526, %v610, 0.0
    %v697 = vsel %vm525, %v614, 0.0
    %v698 = vsel %vm526, %v614, 0.0
    %v699 = vsel %vm525, %v618, 0.0
    %v700 = vsel %vm526, %v618, 0.0
    %v701 = vsel %vm525, %v622, 0.0
    %v702 = vsel %vm526, %v622, 0.0
    %v703 = vsel %vm525, %v626, 0.0
    %v704 = vsel %vm526, %v626, 0.0
    %v705 = vsel %vm525, %v630, 0.0
    %v706 = vsel %vm526, %v630, 0.0
    %v707 = vsel %vm525, %v634, 0.0
    %v708 = vsel %vm526, %v634, 0.0
    %v709 = vsel %vm525, %v638, 0.0
    %v710 = vsel %vm526, %v638, 0.0
    %v711 = vsel %vm525, %v642, 0.0
    %v712 = vsel %vm526, %v642, 0.0
    %v713 = vsel %vm525, %v646, 0.0
    %v714 = vsel %vm526, %v646, 0.0
    %v715 = vsel %vm525, %v650, 0.0
    %v716 = vsel %vm526, %v650, 0.0
    %v717 = vsel %vm525, %v654, 0.0
    %v718 = vsel %vm526, %v654, 0.0
    %v719 = vadd.f32 %v457, %v655
    %v720 = vadd.f32 %v458, %v656
    %v721 = vadd.f32 %v459, %v657
    %v722 = vadd.f32 %v460, %v658
    %v723 = vadd.f32 %v461, %v659
    %v724 = vadd.f32 %v462, %v660
    %v725 = vadd.f32 %v463, %v661
    %v726 = vadd.f32 %v464, %v662
    %v727 = vadd.f32 %v465, %v663
    %v728 = vadd.f32 %v466, %v664
    %v729 = vadd.f32 %v467, %v665
    %v730 = vadd.f32 %v468, %v666
    %v731 = vadd.f32 %v469, %v667
    %v732 = vadd.f32 %v470, %v668
    %v733 = vadd.f32 %v471, %v669
    %v734 = vadd.f32 %v472, %v670
    %v735 = vadd.f32 %v473, %v671
    %v736 = vadd.f32 %v474, %v672
    %v737 = vadd.f32 %v475, %v673
    %v738 = vadd.f32 %v476, %v674
    %v739 = vadd.f32 %v477, %v675
    %v740 = vadd.f32 %v478, %v676
    %v741 = vadd.f32 %v479, %v677
    %v742 = vadd.f32 %v480, %v678
    %v743 = vadd.f32 %v481, %v679
    %v744 = vadd.f32 %v482, %v680
    %v745 = vadd.f32 %v483, %v681
    %v746 = vadd.f32 %v484, %v682
    %v747 = vadd.f32 %v485, %v683
    %v748 = vadd.f32 %v486, %v684
    %v749 = vadd.f32 %v487, %v685
    %v750 = vadd.f32 %v488, %v686
    %v751 = vadd.f32 %v489, %v687
    %v752 = vadd.f32 %v490, %v688
    %v753 = vadd.f32 %v491, %v689
    %v754 = vadd.f32 %v492, %v690
    %v755 = vadd.f32 %v493, %v691
    %v756 = vadd.f32 %v494, %v692
    %v757 = vadd.f32 %v495, %v693
    %v758 = vadd.f32 %v496, %v694
    %v759 = vadd.f32 %v497, %v695
    %v760 = vadd.f32 %v498, %v696
    %v761 = vadd.f32 %v499, %v697
    %v762 = vadd.f32 %v500, %v698
    %v763 = vadd.f32 %v501, %v699
    %v764 = vadd.f32 %v502, %v700
    %v765 = vadd.f32 %v503, %v701
    %v766 = vadd.f32 %v504, %v702
    %v767 = vadd.f32 %v505, %v703
    %v768 = vadd.f32 %v506, %v704
    %v769 = vadd.f32 %v507, %v705
    %v770 = vadd.f32 %v508, %v706
    %v771 = vadd.f32 %v509, %v707
    %v772 = vadd.f32 %v510, %v708
    %v773 = vadd.f32 %v511, %v709
    %v774 = vadd.f32 %v512, %v710
    %v775 = vadd.f32 %v513, %v711
    %v776 = vadd.f32 %v514, %v712
    %v777 = vadd.f32 %v515, %v713
    %v778 = vadd.f32 %v516, %v714
    %v779 = vadd.f32 %v517, %v715
    %v780 = vadd.f32 %v518, %v716
    %v781 = vadd.f32 %v519, %v717
    %v782 = vadd.f32 %v520, %v718
    %vm783 = vcmp.eq.s32.totalorder %v123, 14
    %vm784 = vcmp.eq.s32.totalorder %v124, 14
    %v785 = vsel %vm783, 1, 0
    %v786 = vsel %vm784, 1, 0
    %vm787 = vcmp.eq.s32.totalorder %v785, 1
    %vm788 = vcmp.eq.s32.totalorder %v786, 1
    %v789 = vlaneseq
    %v790 = vshrl.u32 %v789, 7
    %v791 = vsub.s32 7, %v790
    %v792 = vrot.slane %v27, %v791
    %v793 = vlaneseq
    %v794 = vshrl.u32 %v793, 7
    %v795 = vsub.s32 7, %v794
    %v796 = vrot.slane %v29, %v795
    %v797 = vlaneseq
    %v798 = vshrl.u32 %v797, 7
    %v799 = vsub.s32 7, %v798
    %v800 = vrot.slane %v31, %v799
    %v801 = vlaneseq
    %v802 = vshrl.u32 %v801, 7
    %v803 = vsub.s32 7, %v802
    %v804 = vrot.slane %v33, %v803
    %v805 = vlaneseq
    %v806 = vshrl.u32 %v805, 7
    %v807 = vsub.s32 7, %v806
    %v808 = vrot.slane %v35, %v807
    %v809 = vlaneseq
    %v810 = vshrl.u32 %v809, 7
    %v811 = vsub.s32 7, %v810
    %v812 = vrot.slane %v37, %v811
    %v813 = vlaneseq
    %v814 = vshrl.u32 %v813, 7
    %v815 = vsub.s32 7, %v814
    %v816 = vrot.slane %v39, %v815
    %v817 = vlaneseq
    %v818 = vshrl.u32 %v817, 7
    %v819 = vsub.s32 7, %v818
    %v820 = vrot.slane %v41, %v819
    %v821 = vlaneseq
    %v822 = vshrl.u32 %v821, 7
    %v823 = vsub.s32 7, %v822
    %v824 = vrot.slane %v43, %v823
    %v825 = vlaneseq
    %v826 = vshrl.u32 %v825, 7
    %v827 = vsub.s32 7, %v826
    %v828 = vrot.slane %v45, %v827
    %v829 = vlaneseq
    %v830 = vshrl.u32 %v829, 7
    %v831 = vsub.s32 7, %v830
    %v832 = vrot.slane %v47, %v831
    %v833 = vlaneseq
    %v834 = vshrl.u32 %v833, 7
    %v835 = vsub.s32 7, %v834
    %v836 = vrot.slane %v49, %v835
    %v837 = vlaneseq
    %v838 = vshrl.u32 %v837, 7
    %v839 = vsub.s32 7, %v838
    %v840 = vrot.slane %v51, %v839
    %v841 = vlaneseq
    %v842 = vshrl.u32 %v841, 7
    %v843 = vsub.s32 7, %v842
    %v844 = vrot.slane %v53, %v843
    %v845 = vlaneseq
    %v846 = vshrl.u32 %v845, 7
    %v847 = vsub.s32 7, %v846
    %v848 = vrot.slane %v55, %v847
    %v849 = vlaneseq
    %v850 = vshrl.u32 %v849, 7
    %v851 = vsub.s32 7, %v850
    %v852 = vrot.slane %v57, %v851
    %v853 = vlaneseq
    %v854 = vshrl.u32 %v853, 7
    %v855 = vsub.s32 7, %v854
    %v856 = vrot.slane %v59, %v855
    %v857 = vlaneseq
    %v858 = vshrl.u32 %v857, 7
    %v859 = vsub.s32 7, %v858
    %v860 = vrot.slane %v61, %v859
    %v861 = vlaneseq
    %v862 = vshrl.u32 %v861, 7
    %v863 = vsub.s32 7, %v862
    %v864 = vrot.slane %v63, %v863
    %v865 = vlaneseq
    %v866 = vshrl.u32 %v865, 7
    %v867 = vsub.s32 7, %v866
    %v868 = vrot.slane %v65, %v867
    %v869 = vlaneseq
    %v870 = vshrl.u32 %v869, 7
    %v871 = vsub.s32 7, %v870
    %v872 = vrot.slane %v67, %v871
    %v873 = vlaneseq
    %v874 = vshrl.u32 %v873, 7
    %v875 = vsub.s32 7, %v874
    %v876 = vrot.slane %v69, %v875
    %v877 = vlaneseq
    %v878 = vshrl.u32 %v877, 7
    %v879 = vsub.s32 7, %v878
    %v880 = vrot.slane %v71, %v879
    %v881 = vlaneseq
    %v882 = vshrl.u32 %v881, 7
    %v883 = vsub.s32 7, %v882
    %v884 = vrot.slane %v73, %v883
    %v885 = vlaneseq
    %v886 = vshrl.u32 %v885, 7
    %v887 = vsub.s32 7, %v886
    %v888 = vrot.slane %v75, %v887
    %v889 = vlaneseq
    %v890 = vshrl.u32 %v889, 7
    %v891 = vsub.s32 7, %v890
    %v892 = vrot.slane %v77, %v891
    %v893 = vlaneseq
    %v894 = vshrl.u32 %v893, 7
    %v895 = vsub.s32 7, %v894
    %v896 = vrot.slane %v79, %v895
    %v897 = vlaneseq
    %v898 = vshrl.u32 %v897, 7
    %v899 = vsub.s32 7, %v898
    %v900 = vrot.slane %v81, %v899
    %v901 = vlaneseq
    %v902 = vshrl.u32 %v901, 7
    %v903 = vsub.s32 7, %v902
    %v904 = vrot.slane %v83, %v903
    %v905 = vlaneseq
    %v906 = vshrl.u32 %v905, 7
    %v907 = vsub.s32 7, %v906
    %v908 = vrot.slane %v85, %v907
    %v909 = vlaneseq
    %v910 = vshrl.u32 %v909, 7
    %v911 = vsub.s32 7, %v910
    %v912 = vrot.slane %v87, %v911
    %v913 = vlaneseq
    %v914 = vshrl.u32 %v913, 7
    %v915 = vsub.s32 7, %v914
    %v916 = vrot.slane %v89, %v915
    %v917 = vsel %vm787, %v792, 0.0
    %v918 = vsel %vm788, %v792, 0.0
    %v919 = vsel %vm787, %v796, 0.0
    %v920 = vsel %vm788, %v796, 0.0
    %v921 = vsel %vm787, %v800, 0.0
    %v922 = vsel %vm788, %v800, 0.0
    %v923 = vsel %vm787, %v804, 0.0
    %v924 = vsel %vm788, %v804, 0.0
    %v925 = vsel %vm787, %v808, 0.0
    %v926 = vsel %vm788, %v808, 0.0
    %v927 = vsel %vm787, %v812, 0.0
    %v928 = vsel %vm788, %v812, 0.0
    %v929 = vsel %vm787, %v816, 0.0
    %v930 = vsel %vm788, %v816, 0.0
    %v931 = vsel %vm787, %v820, 0.0
    %v932 = vsel %vm788, %v820, 0.0
    %v933 = vsel %vm787, %v824, 0.0
    %v934 = vsel %vm788, %v824, 0.0
    %v935 = vsel %vm787, %v828, 0.0
    %v936 = vsel %vm788, %v828, 0.0
    %v937 = vsel %vm787, %v832, 0.0
    %v938 = vsel %vm788, %v832, 0.0
    %v939 = vsel %vm787, %v836, 0.0
    %v940 = vsel %vm788, %v836, 0.0
    %v941 = vsel %vm787, %v840, 0.0
    %v942 = vsel %vm788, %v840, 0.0
    %v943 = vsel %vm787, %v844, 0.0
    %v944 = vsel %vm788, %v844, 0.0
    %v945 = vsel %vm787, %v848, 0.0
    %v946 = vsel %vm788, %v848, 0.0
    %v947 = vsel %vm787, %v852, 0.0
    %v948 = vsel %vm788, %v852, 0.0
    %v949 = vsel %vm787, %v856, 0.0
    %v950 = vsel %vm788, %v856, 0.0
    %v951 = vsel %vm787, %v860, 0.0
    %v952 = vsel %vm788, %v860, 0.0
    %v953 = vsel %vm787, %v864, 0.0
    %v954 = vsel %vm788, %v864, 0.0
    %v955 = vsel %vm787, %v868, 0.0
    %v956 = vsel %vm788, %v868, 0.0
    %v957 = vsel %vm787, %v872, 0.0
    %v958 = vsel %vm788, %v872, 0.0
    %v959 = vsel %vm787, %v876, 0.0
    %v960 = vsel %vm788, %v876, 0.0
    %v961 = vsel %vm787, %v880, 0.0
    %v962 = vsel %vm788, %v880, 0.0
    %v963 = vsel %vm787, %v884, 0.0
    %v964 = vsel %vm788, %v884, 0.0
    %v965 = vsel %vm787, %v888, 0.0
    %v966 = vsel %vm788, %v888, 0.0
    %v967 = vsel %vm787, %v892, 0.0
    %v968 = vsel %vm788, %v892, 0.0
    %v969 = vsel %vm787, %v896, 0.0
    %v970 = vsel %vm788, %v896, 0.0
    %v971 = vsel %vm787, %v900, 0.0
    %v972 = vsel %vm788, %v900, 0.0
    %v973 = vsel %vm787, %v904, 0.0
    %v974 = vsel %vm788, %v904, 0.0
    %v975 = vsel %vm787, %v908, 0.0
    %v976 = vsel %vm788, %v908, 0.0
    %v977 = vsel %vm787, %v912, 0.0
    %v978 = vsel %vm788, %v912, 0.0
    %v979 = vsel %vm787, %v916, 0.0
    %v980 = vsel %vm788, %v916, 0.0
    %v981 = vadd.f32 %v719, %v917
    %v982 = vadd.f32 %v720, %v918
    %v983 = vadd.f32 %v721, %v919
    %v984 = vadd.f32 %v722, %v920
    %v985 = vadd.f32 %v723, %v921
    %v986 = vadd.f32 %v724, %v922
    %v987 = vadd.f32 %v725, %v923
    %v988 = vadd.f32 %v726, %v924
    %v989 = vadd.f32 %v727, %v925
    %v990 = vadd.f32 %v728, %v926
    %v991 = vadd.f32 %v729, %v927
    %v992 = vadd.f32 %v730, %v928
    %v993 = vadd.f32 %v731, %v929
    %v994 = vadd.f32 %v732, %v930
    %v995 = vadd.f32 %v733, %v931
    %v996 = vadd.f32 %v734, %v932
    %v997 = vadd.f32 %v735, %v933
    %v998 = vadd.f32 %v736, %v934
    %v999 = vadd.f32 %v737, %v935
    %v1000 = vadd.f32 %v738, %v936
    %v1001 = vadd.f32 %v739, %v937
    %v1002 = vadd.f32 %v740, %v938
    %v1003 = vadd.f32 %v741, %v939
    %v1004 = vadd.f32 %v742, %v940
    %v1005 = vadd.f32 %v743, %v941
    %v1006 = vadd.f32 %v744, %v942
    %v1007 = vadd.f32 %v745, %v943
    %v1008 = vadd.f32 %v746, %v944
    %v1009 = vadd.f32 %v747, %v945
    %v1010 = vadd.f32 %v748, %v946
    %v1011 = vadd.f32 %v749, %v947
    %v1012 = vadd.f32 %v750, %v948
    %v1013 = vadd.f32 %v751, %v949
    %v1014 = vadd.f32 %v752, %v950
    %v1015 = vadd.f32 %v753, %v951
    %v1016 = vadd.f32 %v754, %v952
    %v1017 = vadd.f32 %v755, %v953
    %v1018 = vadd.f32 %v756, %v954
    %v1019 = vadd.f32 %v757, %v955
    %v1020 = vadd.f32 %v758, %v956
    %v1021 = vadd.f32 %v759, %v957
    %v1022 = vadd.f32 %v760, %v958
    %v1023 = vadd.f32 %v761, %v959
    %v1024 = vadd.f32 %v762, %v960
    %v1025 = vadd.f32 %v763, %v961
    %v1026 = vadd.f32 %v764, %v962
    %v1027 = vadd.f32 %v765, %v963
    %v1028 = vadd.f32 %v766, %v964
    %v1029 = vadd.f32 %v767, %v965
    %v1030 = vadd.f32 %v768, %v966
    %v1031 = vadd.f32 %v769, %v967
    %v1032 = vadd.f32 %v770, %v968
    %v1033 = vadd.f32 %v771, %v969
    %v1034 = vadd.f32 %v772, %v970
    %v1035 = vadd.f32 %v773, %v971
    %v1036 = vadd.f32 %v774, %v972
    %v1037 = vadd.f32 %v775, %v973
    %v1038 = vadd.f32 %v776, %v974
    %v1039 = vadd.f32 %v777, %v975
    %v1040 = vadd.f32 %v778, %v976
    %v1041 = vadd.f32 %v779, %v977
    %v1042 = vadd.f32 %v780, %v978
    %v1043 = vadd.f32 %v781, %v979
    %v1044 = vadd.f32 %v782, %v980
    %v1045 = vadd.f32 %v26, %v981
    %v1046 = vadd.f32 %v27, %v982
    %v1047 = vadd.f32 %v28, %v983
    %v1048 = vadd.f32 %v29, %v984
    %v1049 = vadd.f32 %v30, %v985
    %v1050 = vadd.f32 %v31, %v986
    %v1051 = vadd.f32 %v32, %v987
    %v1052 = vadd.f32 %v33, %v988
    %v1053 = vadd.f32 %v34, %v989
    %v1054 = vadd.f32 %v35, %v990
    %v1055 = vadd.f32 %v36, %v991
    %v1056 = vadd.f32 %v37, %v992
    %v1057 = vadd.f32 %v38, %v993
    %v1058 = vadd.f32 %v39, %v994
    %v1059 = vadd.f32 %v40, %v995
    %v1060 = vadd.f32 %v41, %v996
    %v1061 = vadd.f32 %v42, %v997
    %v1062 = vadd.f32 %v43, %v998
    %v1063 = vadd.f32 %v44, %v999
    %v1064 = vadd.f32 %v45, %v1000
    %v1065 = vadd.f32 %v46, %v1001
    %v1066 = vadd.f32 %v47, %v1002
    %v1067 = vadd.f32 %v48, %v1003
    %v1068 = vadd.f32 %v49, %v1004
    %v1069 = vadd.f32 %v50, %v1005
    %v1070 = vadd.f32 %v51, %v1006
    %v1071 = vadd.f32 %v52, %v1007
    %v1072 = vadd.f32 %v53, %v1008
    %v1073 = vadd.f32 %v54, %v1009
    %v1074 = vadd.f32 %v55, %v1010
    %v1075 = vadd.f32 %v56, %v1011
    %v1076 = vadd.f32 %v57, %v1012
    %v1077 = vadd.f32 %v58, %v1013
    %v1078 = vadd.f32 %v59, %v1014
    %v1079 = vadd.f32 %v60, %v1015
    %v1080 = vadd.f32 %v61, %v1016
    %v1081 = vadd.f32 %v62, %v1017
    %v1082 = vadd.f32 %v63, %v1018
    %v1083 = vadd.f32 %v64, %v1019
    %v1084 = vadd.f32 %v65, %v1020
    %v1085 = vadd.f32 %v66, %v1021
    %v1086 = vadd.f32 %v67, %v1022
    %v1087 = vadd.f32 %v68, %v1023
    %v1088 = vadd.f32 %v69, %v1024
    %v1089 = vadd.f32 %v70, %v1025
    %v1090 = vadd.f32 %v71, %v1026
    %v1091 = vadd.f32 %v72, %v1027
    %v1092 = vadd.f32 %v73, %v1028
    %v1093 = vadd.f32 %v74, %v1029
    %v1094 = vadd.f32 %v75, %v1030
    %v1095 = vadd.f32 %v76, %v1031
    %v1096 = vadd.f32 %v77, %v1032
    %v1097 = vadd.f32 %v78, %v1033
    %v1098 = vadd.f32 %v79, %v1034
    %v1099 = vadd.f32 %v80, %v1035
    %v1100 = vadd.f32 %v81, %v1036
    %v1101 = vadd.f32 %v82, %v1037
    %v1102 = vadd.f32 %v83, %v1038
    %v1103 = vadd.f32 %v84, %v1039
    %v1104 = vadd.f32 %v85, %v1040
    %v1105 = vadd.f32 %v86, %v1041
    %v1106 = vadd.f32 %v87, %v1042
    %v1107 = vadd.f32 %v88, %v1043
    %v1108 = vadd.f32 %v89, %v1044
    %v1109 = vadd.f32 %v1045, %v1047
    %v1110 = vadd.f32 %v1046, %v1048
    %v1111 = vadd.f32 %v1047, %v1049
    %v1112 = vadd.f32 %v1048, %v1050
    %v1113 = vadd.f32 %v1049, %v1051
    %v1114 = vadd.f32 %v1050, %v1052
    %v1115 = vadd.f32 %v1051, %v1053
    %v1116 = vadd.f32 %v1052, %v1054
    %v1117 = vadd.f32 %v1053, %v1055
    %v1118 = vadd.f32 %v1054, %v1056
    %v1119 = vadd.f32 %v1055, %v1057
    %v1120 = vadd.f32 %v1056, %v1058
    %v1121 = vadd.f32 %v1057, %v1059
    %v1122 = vadd.f32 %v1058, %v1060
    %v1123 = vadd.f32 %v1059, %v1061
    %v1124 = vadd.f32 %v1060, %v1062
    %v1125 = vadd.f32 %v1061, %v1063
    %v1126 = vadd.f32 %v1062, %v1064
    %v1127 = vadd.f32 %v1063, %v1065
    %v1128 = vadd.f32 %v1064, %v1066
    %v1129 = vadd.f32 %v1065, %v1067
    %v1130 = vadd.f32 %v1066, %v1068
    %v1131 = vadd.f32 %v1067, %v1069
    %v1132 = vadd.f32 %v1068, %v1070
    %v1133 = vadd.f32 %v1069, %v1071
    %v1134 = vadd.f32 %v1070, %v1072
    %v1135 = vadd.f32 %v1071, %v1073
    %v1136 = vadd.f32 %v1072, %v1074
    %v1137 = vadd.f32 %v1077, %v1079
    %v1138 = vadd.f32 %v1078, %v1080
    %v1139 = vadd.f32 %v1079, %v1081
    %v1140 = vadd.f32 %v1080, %v1082
    %v1141 = vadd.f32 %v1081, %v1083
    %v1142 = vadd.f32 %v1082, %v1084
    %v1143 = vadd.f32 %v1083, %v1085
    %v1144 = vadd.f32 %v1084, %v1086
    %v1145 = vadd.f32 %v1085, %v1087
    %v1146 = vadd.f32 %v1086, %v1088
    %v1147 = vadd.f32 %v1087, %v1089
    %v1148 = vadd.f32 %v1088, %v1090
    %v1149 = vadd.f32 %v1089, %v1091
    %v1150 = vadd.f32 %v1090, %v1092
    %v1151 = vadd.f32 %v1091, %v1093
    %v1152 = vadd.f32 %v1092, %v1094
    %v1153 = vadd.f32 %v1093, %v1095
    %v1154 = vadd.f32 %v1094, %v1096
    %v1155 = vadd.f32 %v1095, %v1097
    %v1156 = vadd.f32 %v1096, %v1098
    %v1157 = vadd.f32 %v1097, %v1099
    %v1158 = vadd.f32 %v1098, %v1100
    %v1159 = vadd.f32 %v1099, %v1101
    %v1160 = vadd.f32 %v1100, %v1102
    %v1161 = vadd.f32 %v1101, %v1103
    %v1162 = vadd.f32 %v1102, %v1104
    %v1163 = vadd.f32 %v1103, %v1105
    %v1164 = vadd.f32 %v1104, %v1106
    %v1165 = vadd.f32 %v1109, %v1049
    %v1166 = vadd.f32 %v1110, %v1050
    %v1167 = vadd.f32 %v1111, %v1051
    %v1168 = vadd.f32 %v1112, %v1052
    %v1169 = vadd.f32 %v1113, %v1053
    %v1170 = vadd.f32 %v1114, %v1054
    %v1171 = vadd.f32 %v1115, %v1055
    %v1172 = vadd.f32 %v1116, %v1056
    %v1173 = vadd.f32 %v1117, %v1057
    %v1174 = vadd.f32 %v1118, %v1058
    %v1175 = vadd.f32 %v1119, %v1059
    %v1176 = vadd.f32 %v1120, %v1060
    %v1177 = vadd.f32 %v1121, %v1061
    %v1178 = vadd.f32 %v1122, %v1062
    %v1179 = vadd.f32 %v1123, %v1063
    %v1180 = vadd.f32 %v1124, %v1064
    %v1181 = vadd.f32 %v1125, %v1065
    %v1182 = vadd.f32 %v1126, %v1066
    %v1183 = vadd.f32 %v1127, %v1067
    %v1184 = vadd.f32 %v1128, %v1068
    %v1185 = vadd.f32 %v1129, %v1069
    %v1186 = vadd.f32 %v1130, %v1070
    %v1187 = vadd.f32 %v1131, %v1071
    %v1188 = vadd.f32 %v1132, %v1072
    %v1189 = vadd.f32 %v1133, %v1073
    %v1190 = vadd.f32 %v1134, %v1074
    %v1191 = vadd.f32 %v1135, %v1075
    %v1192 = vadd.f32 %v1136, %v1076
    %v1193 = vadd.f32 %v1137, %v1081
    %v1194 = vadd.f32 %v1138, %v1082
    %v1195 = vadd.f32 %v1139, %v1083
    %v1196 = vadd.f32 %v1140, %v1084
    %v1197 = vadd.f32 %v1141, %v1085
    %v1198 = vadd.f32 %v1142, %v1086
    %v1199 = vadd.f32 %v1143, %v1087
    %v1200 = vadd.f32 %v1144, %v1088
    %v1201 = vadd.f32 %v1145, %v1089
    %v1202 = vadd.f32 %v1146, %v1090
    %v1203 = vadd.f32 %v1147, %v1091
    %v1204 = vadd.f32 %v1148, %v1092
    %v1205 = vadd.f32 %v1149, %v1093
    %v1206 = vadd.f32 %v1150, %v1094
    %v1207 = vadd.f32 %v1151, %v1095
    %v1208 = vadd.f32 %v1152, %v1096
    %v1209 = vadd.f32 %v1153, %v1097
    %v1210 = vadd.f32 %v1154, %v1098
    %v1211 = vadd.f32 %v1155, %v1099
    %v1212 = vadd.f32 %v1156, %v1100
    %v1213 = vadd.f32 %v1157, %v1101
    %v1214 = vadd.f32 %v1158, %v1102
    %v1215 = vadd.f32 %v1159, %v1103
    %v1216 = vadd.f32 %v1160, %v1104
    %v1217 = vadd.f32 %v1161, %v1105
    %v1218 = vadd.f32 %v1162, %v1106
    %v1219 = vadd.f32 %v1163, %v1107
    %v1220 = vadd.f32 %v1164, %v1108
    %1222 = vset.pattern.permute.xlu0 0
    %1223 = vperm.xlu0 %1222, %v92
    %v1224 = vpop.permute.xlu0 %1223
    %1227 = vset.pattern.permute.xlu0 0
    %1228 = vperm.xlu0 %1227, %v93
    %v1229 = vpop.permute.xlu0 %1228
    %1232 = vset.pattern.permute.xlu0 0
    %1233 = vperm.xlu0 %1232, %v94
    %v1234 = vpop.permute.xlu0 %1233
    %1237 = vset.pattern.permute.xlu0 0
    %1238 = vperm.xlu0 %1237, %v95
    %v1239 = vpop.permute.xlu0 %1238
    %1242 = vset.pattern.permute.xlu0 0
    %1243 = vperm.xlu0 %1242, %v96
    %v1244 = vpop.permute.xlu0 %1243
    %1247 = vset.pattern.permute.xlu0 0
    %1248 = vperm.xlu0 %1247, %v97
    %v1249 = vpop.permute.xlu0 %1248
    %1252 = vset.pattern.permute.xlu0 0
    %1253 = vperm.xlu0 %1252, %v98
    %v1254 = vpop.permute.xlu0 %1253
    %1257 = vset.pattern.permute.xlu0 0
    %1258 = vperm.xlu0 %1257, %v99
    %v1259 = vpop.permute.xlu0 %1258
    %1262 = vset.pattern.permute.xlu0 0
    %1263 = vperm.xlu0 %1262, %v100
    %v1264 = vpop.permute.xlu0 %1263
    %1267 = vset.pattern.permute.xlu0 0
    %1268 = vperm.xlu0 %1267, %v101
    %v1269 = vpop.permute.xlu0 %1268
    %1272 = vset.pattern.permute.xlu0 0
    %1273 = vperm.xlu0 %1272, %v102
    %v1274 = vpop.permute.xlu0 %1273
    %1277 = vset.pattern.permute.xlu0 0
    %1278 = vperm.xlu0 %1277, %v103
    %v1279 = vpop.permute.xlu0 %1278
    %1282 = vset.pattern.permute.xlu0 0
    %1283 = vperm.xlu0 %1282, %v104
    %v1284 = vpop.permute.xlu0 %1283
    %1287 = vset.pattern.permute.xlu0 0
    %1288 = vperm.xlu0 %1287, %v105
    %v1289 = vpop.permute.xlu0 %1288
    %1292 = vset.pattern.permute.xlu0 0
    %1293 = vperm.xlu0 %1292, %v106
    %v1294 = vpop.permute.xlu0 %1293
    %1297 = vset.pattern.permute.xlu0 0
    %1298 = vperm.xlu0 %1297, %v107
    %v1299 = vpop.permute.xlu0 %1298
    %1302 = vset.pattern.permute.xlu0 0
    %1303 = vperm.xlu0 %1302, %v108
    %v1304 = vpop.permute.xlu0 %1303
    %1307 = vset.pattern.permute.xlu0 0
    %1308 = vperm.xlu0 %1307, %v109
    %v1309 = vpop.permute.xlu0 %1308
    %1312 = vset.pattern.permute.xlu0 0
    %1313 = vperm.xlu0 %1312, %v110
    %v1314 = vpop.permute.xlu0 %1313
    %1317 = vset.pattern.permute.xlu0 0
    %1318 = vperm.xlu0 %1317, %v111
    %v1319 = vpop.permute.xlu0 %1318
    %1322 = vset.pattern.permute.xlu0 0
    %1323 = vperm.xlu0 %1322, %v112
    %v1324 = vpop.permute.xlu0 %1323
    %1327 = vset.pattern.permute.xlu0 0
    %1328 = vperm.xlu0 %1327, %v113
    %v1329 = vpop.permute.xlu0 %1328
    %1332 = vset.pattern.permute.xlu0 0
    %1333 = vperm.xlu0 %1332, %v114
    %v1334 = vpop.permute.xlu0 %1333
    %1337 = vset.pattern.permute.xlu0 0
    %1338 = vperm.xlu0 %1337, %v115
    %v1339 = vpop.permute.xlu0 %1338
    %1342 = vset.pattern.permute.xlu0 0
    %1343 = vperm.xlu0 %1342, %v116
    %v1344 = vpop.permute.xlu0 %1343
    %1347 = vset.pattern.permute.xlu0 0
    %1348 = vperm.xlu0 %1347, %v117
    %v1349 = vpop.permute.xlu0 %1348
    %1352 = vset.pattern.permute.xlu0 0
    %1353 = vperm.xlu0 %1352, %v118
    %v1354 = vpop.permute.xlu0 %1353
    %1357 = vset.pattern.permute.xlu0 0
    %1358 = vperm.xlu0 %1357, %v119
    %v1359 = vpop.permute.xlu0 %1358
    %v1361 = vmul.f32 %v1165, %v1224
    %v1362 = vmul.f32 %v1166, %v1229
    %v1363 = vmul.f32 %v1167, %v1234
    %v1364 = vmul.f32 %v1168, %v1239
    %v1365 = vmul.f32 %v1169, %v1244
    %v1366 = vmul.f32 %v1170, %v1249
    %v1367 = vmul.f32 %v1171, %v1254
    %v1368 = vmul.f32 %v1172, %v1259
    %v1369 = vmul.f32 %v1173, %v1264
    %v1370 = vmul.f32 %v1174, %v1269
    %v1371 = vmul.f32 %v1175, %v1274
    %v1372 = vmul.f32 %v1176, %v1279
    %v1373 = vmul.f32 %v1177, %v1284
    %v1374 = vmul.f32 %v1178, %v1289
    %v1375 = vmul.f32 %v1179, %v1294
    %v1376 = vmul.f32 %v1180, %v1299
    %v1377 = vmul.f32 %v1181, %v1304
    %v1378 = vmul.f32 %v1182, %v1309
    %v1379 = vmul.f32 %v1183, %v1314
    %v1380 = vmul.f32 %v1184, %v1319
    %v1381 = vmul.f32 %v1185, %v1324
    %v1382 = vmul.f32 %v1186, %v1329
    %v1383 = vmul.f32 %v1187, %v1334
    %v1384 = vmul.f32 %v1188, %v1339
    %v1385 = vmul.f32 %v1189, %v1344
    %v1386 = vmul.f32 %v1190, %v1349
    %v1387 = vmul.f32 %v1191, %v1354
    %v1388 = vmul.f32 %v1192, %v1359
    %v1389 = vmul.f32 %v1193, %v1224
    %v1390 = vmul.f32 %v1194, %v1229
    %v1391 = vmul.f32 %v1195, %v1234
    %v1392 = vmul.f32 %v1196, %v1239
    %v1393 = vmul.f32 %v1197, %v1244
    %v1394 = vmul.f32 %v1198, %v1249
    %v1395 = vmul.f32 %v1199, %v1254
    %v1396 = vmul.f32 %v1200, %v1259
    %v1397 = vmul.f32 %v1201, %v1264
    %v1398 = vmul.f32 %v1202, %v1269
    %v1399 = vmul.f32 %v1203, %v1274
    %v1400 = vmul.f32 %v1204, %v1279
    %v1401 = vmul.f32 %v1205, %v1284
    %v1402 = vmul.f32 %v1206, %v1289
    %v1403 = vmul.f32 %v1207, %v1294
    %v1404 = vmul.f32 %v1208, %v1299
    %v1405 = vmul.f32 %v1209, %v1304
    %v1406 = vmul.f32 %v1210, %v1309
    %v1407 = vmul.f32 %v1211, %v1314
    %v1408 = vmul.f32 %v1212, %v1319
    %v1409 = vmul.f32 %v1213, %v1324
    %v1410 = vmul.f32 %v1214, %v1329
    %v1411 = vmul.f32 %v1215, %v1334
    %v1412 = vmul.f32 %v1216, %v1339
    %v1413 = vmul.f32 %v1217, %v1344
    %v1414 = vmul.f32 %v1218, %v1349
    %v1415 = vmul.f32 %v1219, %v1354
    %v1416 = vmul.f32 %v1220, %v1359
    %v1417 = vsub.f32 %v1361, %v28
    %v1418 = vsub.f32 %v1362, %v29
    %v1419 = vsub.f32 %v1363, %v30
    %v1420 = vsub.f32 %v1364, %v31
    %v1421 = vsub.f32 %v1365, %v32
    %v1422 = vsub.f32 %v1366, %v33
    %v1423 = vsub.f32 %v1367, %v34
    %v1424 = vsub.f32 %v1368, %v35
    %v1425 = vsub.f32 %v1369, %v36
    %v1426 = vsub.f32 %v1370, %v37
    %v1427 = vsub.f32 %v1371, %v38
    %v1428 = vsub.f32 %v1372, %v39
    %v1429 = vsub.f32 %v1373, %v40
    %v1430 = vsub.f32 %v1374, %v41
    %v1431 = vsub.f32 %v1375, %v42
    %v1432 = vsub.f32 %v1376, %v43
    %v1433 = vsub.f32 %v1377, %v44
    %v1434 = vsub.f32 %v1378, %v45
    %v1435 = vsub.f32 %v1379, %v46
    %v1436 = vsub.f32 %v1380, %v47
    %v1437 = vsub.f32 %v1381, %v48
    %v1438 = vsub.f32 %v1382, %v49
    %v1439 = vsub.f32 %v1383, %v50
    %v1440 = vsub.f32 %v1384, %v51
    %v1441 = vsub.f32 %v1385, %v52
    %v1442 = vsub.f32 %v1386, %v53
    %v1443 = vsub.f32 %v1387, %v54
    %v1444 = vsub.f32 %v1388, %v55
    %v1445 = vsub.f32 %v1389, %v60
    %v1446 = vsub.f32 %v1390, %v61
    %v1447 = vsub.f32 %v1391, %v62
    %v1448 = vsub.f32 %v1392, %v63
    %v1449 = vsub.f32 %v1393, %v64
    %v1450 = vsub.f32 %v1394, %v65
    %v1451 = vsub.f32 %v1395, %v66
    %v1452 = vsub.f32 %v1396, %v67
    %v1453 = vsub.f32 %v1397, %v68
    %v1454 = vsub.f32 %v1398, %v69
    %v1455 = vsub.f32 %v1399, %v70
    %v1456 = vsub.f32 %v1400, %v71
    %v1457 = vsub.f32 %v1401, %v72
    %v1458 = vsub.f32 %v1402, %v73
    %v1459 = vsub.f32 %v1403, %v74
    %v1460 = vsub.f32 %v1404, %v75
    %v1461 = vsub.f32 %v1405, %v76
    %v1462 = vsub.f32 %v1406, %v77
    %v1463 = vsub.f32 %v1407, %v78
    %v1464 = vsub.f32 %v1408, %v79
    %v1465 = vsub.f32 %v1409, %v80
    %v1466 = vsub.f32 %v1410, %v81
    %v1467 = vsub.f32 %v1411, %v82
    %v1468 = vsub.f32 %v1412, %v83
    %v1469 = vsub.f32 %v1413, %v84
    %v1470 = vsub.f32 %v1414, %v85
    %v1471 = vsub.f32 %v1415, %v86
    %v1472 = vsub.f32 %v1416, %v87
    %1474 = vset.pattern.permute.xlu0 0
    %1475 = vperm.xlu0 %1474, %v90
    %v1476 = vpop.permute.xlu0 %1475
    %1479 = vset.pattern.permute.xlu0 0
    %1480 = vperm.xlu0 %1479, %v91
    %v1481 = vpop.permute.xlu0 %1480
    %v1483 = vmul.f32 %v1109, %v1476
    %v1484 = vmul.f32 %v1110, %v1481
    %v1485 = vmul.f32 %v1137, %v1476
    %v1486 = vmul.f32 %v1138, %v1481
    %v1487 = vsub.f32 %v1483, %v26
    %v1488 = vsub.f32 %v1484, %v27
    %v1489 = vsub.f32 %v1485, %v58
    %v1490 = vsub.f32 %v1486, %v59
    %v1491 = vadd.f32 %v1073, %v1075
    %v1492 = vadd.f32 %v1074, %v1076
    %v1493 = vadd.f32 %v1105, %v1107
    %v1494 = vadd.f32 %v1106, %v1108
    %1496 = vset.pattern.permute.xlu0 0
    %1497 = vperm.xlu0 %1496, %v120
    %v1498 = vpop.permute.xlu0 %1497
    %1501 = vset.pattern.permute.xlu0 0
    %1502 = vperm.xlu0 %1501, %v121
    %v1503 = vpop.permute.xlu0 %1502
    %v1505 = vmul.f32 %v1491, %v1498
    %v1506 = vmul.f32 %v1492, %v1503
    %v1507 = vmul.f32 %v1493, %v1498
    %v1508 = vmul.f32 %v1494, %v1503
    %v1509 = vsub.f32 %v1505, %v56
    %v1510 = vsub.f32 %v1506, %v57
    %v1511 = vsub.f32 %v1507, %v88
    %v1512 = vsub.f32 %v1508, %v89
    %s1513 = scalar_lea.vmem [#allocation5], 16
    %1514 = vst [vmem:[%s1513] sm:$0xff] %v1417
    %1515 = vst [vmem:[%s1513 + $0x8] sm:$0xff] %v1418
    %1516 = vst [vmem:[%s1513 + $0x10] sm:$0xff] %v1419
    %1517 = vst [vmem:[%s1513 + $0x18] sm:$0xff] %v1420
    %1518 = vst [vmem:[%s1513 + $0x20] sm:$0xff] %v1421
    %1519 = vst [vmem:[%s1513 + $0x28] sm:$0xff] %v1422
    %1520 = vst [vmem:[%s1513 + $0x30] sm:$0xff] %v1423
    %1521 = vst [vmem:[%s1513 + $0x38] sm:$0xff] %v1424
    %1522 = vst [vmem:[%s1513 + $0x40] sm:$0xff] %v1425
    %1523 = vst [vmem:[%s1513 + $0x48] sm:$0xff] %v1426
    %1524 = vst [vmem:[%s1513 + $0x50] sm:$0xff] %v1427
    %1525 = vst [vmem:[%s1513 + $0x58] sm:$0xff] %v1428
    %1526 = vst [vmem:[%s1513 + $0x60] sm:$0xff] %v1429
    %1527 = vst [vmem:[%s1513 + $0x68] sm:$0xff] %v1430
    %1528 = vst [vmem:[%s1513 + $0x70] sm:$0xff] %v1431
    %1529 = vst [vmem:[%s1513 + $0x78] sm:$0xff] %v1432
    %1530 = vst [vmem:[%s1513 + $0x80] sm:$0xff] %v1433
    %1531 = vst [vmem:[%s1513 + $0x88] sm:$0xff] %v1434
    %1532 = vst [vmem:[%s1513 + $0x90] sm:$0xff] %v1435
    %1533 = vst [vmem:[%s1513 + $0x98] sm:$0xff] %v1436
    %1534 = vst [vmem:[%s1513 + $0xa0] sm:$0xff] %v1437
    %1535 = vst [vmem:[%s1513 + $0xa8] sm:$0xff] %v1438
    %1536 = vst [vmem:[%s1513 + $0xb0] sm:$0xff] %v1439
    %1537 = vst [vmem:[%s1513 + $0xb8] sm:$0xff] %v1440
    %1538 = vst [vmem:[%s1513 + $0xc0] sm:$0xff] %v1441
    %1539 = vst [vmem:[%s1513 + $0xc8] sm:$0xff] %v1442
    %1540 = vst [vmem:[%s1513 + $0xd0] sm:$0xff] %v1443
    %1541 = vst [vmem:[%s1513 + $0xd8] sm:$0xff] %v1444
    %1542 = vst [vmem:[%s1513 + $0x100] sm:$0xff] %v1445
    %1543 = vst [vmem:[%s1513 + $0x108] sm:$0xff] %v1446
    %1544 = vst [vmem:[%s1513 + $0x110] sm:$0xff] %v1447
    %1545 = vst [vmem:[%s1513 + $0x118] sm:$0xff] %v1448
    %1546 = vst [vmem:[%s1513 + $0x120] sm:$0xff] %v1449
    %1547 = vst [vmem:[%s1513 + $0x128] sm:$0xff] %v1450
    %1548 = vst [vmem:[%s1513 + $0x130] sm:$0xff] %v1451
    %1549 = vst [vmem:[%s1513 + $0x138] sm:$0xff] %v1452
    %1550 = vst [vmem:[%s1513 + $0x140] sm:$0xff] %v1453
    %1551 = vst [vmem:[%s1513 + $0x148] sm:$0xff] %v1454
    %1552 = vst [vmem:[%s1513 + $0x150] sm:$0xff] %v1455
    %1553 = vst [vmem:[%s1513 + $0x158] sm:$0xff] %v1456
    %1554 = vst [vmem:[%s1513 + $0x160] sm:$0xff] %v1457
    %1555 = vst [vmem:[%s1513 + $0x168] sm:$0xff] %v1458
    %1556 = vst [vmem:[%s1513 + $0x170] sm:$0xff] %v1459
    %1557 = vst [vmem:[%s1513 + $0x178] sm:$0xff] %v1460
    %1558 = vst [vmem:[%s1513 + $0x180] sm:$0xff] %v1461
    %1559 = vst [vmem:[%s1513 + $0x188] sm:$0xff] %v1462
    %1560 = vst [vmem:[%s1513 + $0x190] sm:$0xff] %v1463
    %1561 = vst [vmem:[%s1513 + $0x198] sm:$0xff] %v1464
    %1562 = vst [vmem:[%s1513 + $0x1a0] sm:$0xff] %v1465
    %1563 = vst [vmem:[%s1513 + $0x1a8] sm:$0xff] %v1466
    %1564 = vst [vmem:[%s1513 + $0x1b0] sm:$0xff] %v1467
    %1565 = vst [vmem:[%s1513 + $0x1b8] sm:$0xff] %v1468
    %1566 = vst [vmem:[%s1513 + $0x1c0] sm:$0xff] %v1469
    %1567 = vst [vmem:[%s1513 + $0x1c8] sm:$0xff] %v1470
    %1568 = vst [vmem:[%s1513 + $0x1d0] sm:$0xff] %v1471
    %1569 = vst [vmem:[%s1513 + $0x1d8] sm:$0xff] %v1472
    %1570 = vst [vmem:[#allocation5] sm:$0xff] %v1487
    %1571 = vst [vmem:[#allocation5 + $0x8] sm:$0xff] %v1488
    %1572 = vst [vmem:[#allocation5 + $0x100] sm:$0xff] %v1489
    %1573 = vst [vmem:[#allocation5 + $0x108] sm:$0xff] %v1490
    %s1574 = scalar_lea.vmem [#allocation5], 240
    %1575 = vst [vmem:[%s1574] sm:$0xff] %v1509
    %1576 = vst [vmem:[%s1574 + $0x8] sm:$0xff] %v1510
    %1577 = vst [vmem:[%s1574 + $0x100] sm:$0xff] %v1511
    %1578 = vst [vmem:[%s1574 + $0x108] sm:$0xff] %v1512
    // Predicated region
    $region14: #{tpu_custom_call.1} parent=1 // pred_check
      _
    $region15: #{tpu_custom_call.1} parent=1 // pred_check_branch
      %1580 = sbr.rel (0) target = $region17
    $region16: #{tpu_custom_call.1} parent=1 // pred_region
      %s1582 = ssub.s32 8192, 8192
      %1583 = vsyncadd [#allocation4], %s1582
      %s1584 = sshll.u32 [#allocation5], 4
      %s1585 = int_to_ptr.vmem [resolvable:$true] %s1584
      %1590 = dma.vmem_to_hbm [thread:$0]  %s1585, 8192, %s2, [#allocation4], 128, 128, 8
    $region17: #{tpu_custom_call.1} parent=1 // pred_fallthru
      _
    // Predicated region
    $region18: #{tpu_custom_call.1} parent=1 // pred_check
      _
    $region19: #{tpu_custom_call.1} parent=1 // pred_check_branch
      %1592 = sbr.rel (0) target = $region21
    $region20: #{tpu_custom_call.1} parent=1 // pred_region
      %1593 = dma.done [#allocation4], 8192
    $region21: #{tpu_custom_call.1} parent=1 // pred_fallthru
      _
    %1594 = vsyncpa [#allocation3], 1
    %1595 = vsyncpa [#allocation4], 1

</llo_original>
